<compile_context>
chip_gen: v7x
topology: tpu7x:2x2x1
jax: 0.10.0
libtpu: 0.0.40
codegen_flags: <defaults>
</compile_context>

<pallas_src>
import jax
import jax.numpy as jnp
from jax import lax
from jax.experimental import pallas as pl
from jax.experimental.pallas import tpu as pltpu

# Small config consistent with the reference module.
B = 2       # cfg.batch_size
E = 32      # cfg.embed_size == cfg.pointernet.embed_size (LSTM hidden size)
WSZ = 32    # cfg.pointernet.weight_size
S = 8       # cfg.encoder.sentence_seq_len
T = 8       # cfg.decoder.clip_seq_len
A = 4       # cfg.annoed_seq_len
C3D = 64    # cfg.c3d_fts_dim
LN_EPS = 1e-5

# -------------------- packed-weight row layout (width = 4*E = 128) ----------
# Every unpacked operand starts at lane 0 (review item: avoid lane relayouts).
W_COLS = 4 * E                 # 128 lanes
R_LINW = 0                     # (C3D, E)   cols 0:E
R_WIH = R_LINW + C3D           # (E, 4E)    full width, gate order i,f,g,o
R_WHH = R_WIH + E              # (E, 4E)
R_W1 = R_WHH + E               # (E, WSZ)   cols 0:WSZ
R_W2 = R_W1 + E                # (E, WSZ)   cols 0:WSZ   (own block now)
R_VT = R_W2 + E                # 1 row, cols 0:WSZ
R_BIH = R_VT + 1               # 1 row, full width
R_BHH = R_BIH + 1              # 1 row, full width
R_LINB = R_BHH + 1             # 1 row, cols 0:E
R_PENC = R_LINB + 1            # (S, E) cols 0:E
R_PDEC = R_PENC + S            # (T, E) cols 0:E
R_LNEG = R_PDEC + T            # ln_enc_gamma, 1 row, cols 0:E
R_LNEB = R_LNEG + 1            # ln_enc_beta
R_LNDG = R_LNEB + 1            # ln_dec_gamma
R_LNDB = R_LNDG + 1            # ln_dec_beta
WPACK_ROWS = ((R_LNDB + 1 + 7) // 8) * 8   # pad sublanes to multiple of 8 -> 216

_VMEM = pl.BlockSpec(memory_space=pltpu.MemorySpace.VMEM)


# --------------------------- fused forward kernel ----------------------------
def _sdtt_kernel(vclip_ref, sent_ref, w_ref, o_ref):
    # ---- unpack parameters (static ref slices, all lane-0 aligned) ----
    lin_w = w_ref[R_LINW:R_LINW + C3D, 0:E]          # (C3D, E)
    lin_b = w_ref[R_LINB:R_LINB + 1, 0:E]            # (1, E)
    w_ih = w_ref[R_WIH:R_WIH + E, :]                 # (E, 4E)
    w_hh = w_ref[R_WHH:R_WHH + E, :]                 # (E, 4E)
    w1 = w_ref[R_W1:R_W1 + E, 0:WSZ]                 # (E, WSZ)
    w2 = w_ref[R_W2:R_W2 + E, 0:WSZ]                 # (E, WSZ)
    vt = w_ref[R_VT:R_VT + 1, 0:WSZ]                 # (1, WSZ)
    b_ih = w_ref[R_BIH:R_BIH + 1, :]                 # (1, 4E)
    b_hh = w_ref[R_BHH:R_BHH + 1, :]                 # (1, 4E)
    pos_enc = w_ref[R_PENC:R_PENC + S, 0:E]          # (S, E)
    pos_dec = w_ref[R_PDEC:R_PDEC + T, 0:E]          # (T, E)
    ln_enc_g = w_ref[R_LNEG:R_LNEG + 1, 0:E]         # (1, E)
    ln_enc_b = w_ref[R_LNEB:R_LNEB + 1, 0:E]
    ln_dec_g = w_ref[R_LNDG:R_LNDG + 1, 0:E]
    ln_dec_b = w_ref[R_LNDB:R_LNDB + 1, 0:E]

    # ---- SDTT.linear: c3d feature projection ----
    vfeat = (jnp.dot(vclip_ref[...].reshape(B * T, C3D), lin_w,
                     preferred_element_type=jnp.float32)
             + lin_b).reshape(B, T, E)

    # ---- PositionalEmbedding (+ LayerNorm) for encoder & decoder ----
    def _pos_ln(x, pos, g, b):
        y = x + pos[None]                            # (B, L, E) + (1, L, E)
        mu = jnp.mean(y, axis=-1, keepdims=True)
        var = jnp.mean((y - mu) ** 2, axis=-1, keepdims=True)
        yhat = (y - mu) * lax.rsqrt(var + LN_EPS)
        # TODO(synk): nn.Dropout(0.1) treated as identity (eval-mode determinism).
        return yhat * g[None] + b[None]

    mem = _pos_ln(sent_ref[...], pos_enc, ln_enc_g, ln_enc_b)   # (B, S, E)
    dec = _pos_ln(vfeat, pos_dec, ln_dec_g, ln_dec_b)           # (B, T, E)

    # TODO(synk): TransformerEncoder/Decoder stacks and _make_mask omitted —
    # the reference forward discards their outputs (returns permuted src/tgt),
    # so mem/dec above are exactly what the PointerNetwork receives.

    # ---- PointerNetwork ----
    cell = jnp.max(dec, axis=1)                      # MaxPool2d((T,1)) -> (B, E)
    dec_in = jnp.mean(dec, axis=1)                   # AvgPool2d((T,1)) -> (B, E)
    mask = jnp.zeros((B, T), jnp.float32)
    bg = jnp.int32(0)

    # Loop-invariant hoists (prologue, off the serial per-step chain):
    #   x_part   : dec_in @ w_ih + biases (dec_in never changes in the loop)
    #   dec_whh  : dec @ w_hh  -> the per-step hidden@w_hh becomes a masked
    #              sublane average over this tensor (LSTM gates are linear in h)
    #   h_whh    : step-0 hidden contribution, mem[:, 0, :] @ w_hh
    #   blend1   : W1(dec) is recomputed identically each step in the reference
    dec2d = dec.reshape(B * T, E)
    x_part = (jnp.dot(dec_in, w_ih, preferred_element_type=jnp.float32)
              + b_ih + b_hh)                                         # (B, 4E)
    h_whh = jnp.dot(mem[:, 0, :], w_hh,
                    preferred_element_type=jnp.float32)              # (B, 4E)
    dec_whh = jnp.dot(dec2d, w_hh,
                      preferred_element_type=jnp.float32).reshape(B, T, 4 * E)
    blend1 = jnp.dot(dec2d, w1,
                     preferred_element_type=jnp.float32).reshape(B, T, WSZ)
    vt3 = vt[None]                                                   # (1, 1, WSZ)
    col = lax.broadcasted_iota(jnp.int32, (1, T), 1)                 # (1, T)

    # Lane-constant vectors: single EUP tanh recovers sigmoid (i,f,o blocks)
    # and tanh (g block) simultaneously: act = a*tanh(scale*x) + b with
    # (scale,a,b) = (0.5,0.5,0.5) on i/f/o and (1,1,0) on g.
    lane4e = lax.broadcasted_iota(jnp.int32, (1, 4 * E), 1)
    is_g_blk = (lane4e >= 2 * E) & (lane4e < 3 * E)
    act_scale = jnp.where(is_g_blk, 1.0, 0.5).astype(jnp.float32)    # == a
    act_bias = jnp.where(is_g_blk, 0.0, 0.5).astype(jnp.float32)

    outs = []
    for step in range(A):                            # annoed_seq_len (static unroll)
        # --- LSTMCell(decoder_input, (hidden, cell)), hidden@w_hh hoisted ---
        gates = x_part + h_whh                                        # (B, 4E)
        act = act_scale * jnp.tanh(gates * act_scale) + act_bias      # 1 EUP push
        i_g = act[:, 0 * E:1 * E]
        f_g = act[:, 1 * E:2 * E]
        g_g = act[:, 2 * E:3 * E]
        o_g = act[:, 3 * E:4 * E]
        cell = f_g * cell + i_g * g_g
        h_lstm = o_g * jnp.tanh(cell)

        # --- additive attention scores ---
        blend2 = jnp.dot(h_lstm, w2, preferred_element_type=jnp.float32)  # (B, WSZ)
        blend_sum = jnp.tanh(blend1 + blend2[:, None, :])                 # (B, T, WSZ)
        scores = jnp.sum(blend_sum * vt3, axis=-1)                        # vt(.) -> (B, T)

        # --- out = -log_softmax(scores + 1e-7); masked_fill(prev mask, 7.0) ---
        logits = scores + 1e-7
        m = jnp.max(logits, axis=-1, keepdims=True)
        lse = m + jnp.log(jnp.sum(jnp.exp(logits - m), axis=-1, keepdims=True))
        out = lse - logits
        out = jnp.where(mask > 0.5, 7.0, out)

        # --- temporal_atten: sequential over batch rows; bg carried across
        #     rows AND across steps, exactly as the reference does.
        #     Exact two-reduction leftmost argmin kept (a fused bit-key reduce
        #     would change torch.argmin tie-breaking). ---
        mask_rows = []
        for k in range(B):
            row = out[k:k + 1, :]                    # static sublane slice (1, T)
            valid = col >= bg
            big = jnp.where(valid, row, jnp.float32(3.0e38))
            rowmin = jnp.min(big)
            # leftmost minimum in the valid region (matches torch argmin);
            # if valid is empty (bg >= T) this yields T -> mask row all ones.
            abs_idx = jnp.min(jnp.where(valid & (big == rowmin),
                                        col, jnp.int32(T)))
            mrow = (col < abs_idx).astype(jnp.float32)
            mask_rows.append(mrow)
            bg = jnp.where(bg < T, abs_idx - bg + 1, bg)   # bs[bg:].argmin() + 1
        mask = jnp.concatenate(mask_rows, axis=0)          # (B, T)

        # --- next-step hidden contribution via hoisted dec@w_hh:
        #     mean_t(dec masked_fill(mask,0)) @ w_hh
        #       == (1/T) * sum_t (1 - mask_t) * dec_whh[:, t, :]  (linear pool)
        if step + 1 < A:
            keep = (1.0 - mask)[:, :, None]                           # (B, T, 1)
            h_whh = jnp.sum(dec_whh * keep, axis=1) * (1.0 / T)       # (B, 4E)

        outs.append(out)

    # Single store of all A steps (avoids 4 masked strided stores).
    o_ref[...] = jnp.stack(outs, axis=1)             # (B, A, T)


def _cost_estimate():
    # MXU flops (prologue matmuls + per-step blend2), transcendentals, bytes.
    flops = 2 * (B * T * C3D * E        # linear
                 + B * T * E * 4 * E    # dec @ w_hh (hoisted)
                 + B * T * E * WSZ      # blend1
                 + 2 * B * E * 4 * E    # x_part + h0 @ w_hh
                 + A * B * E * WSZ)     # blend2 per step
    trans = A * B * (4 * E + E + T * WSZ + T + 1) + B * (S + T)
    bytes_accessed = 4 * (B * T * C3D + B * S * E
                          + WPACK_ROWS * W_COLS + B * A * T)
    return pl.CostEstimate(flops=flops, transcendentals=trans,
                           bytes_accessed=bytes_accessed)


def sdtt_fused_call(wpack, video_clip_feat, sentence_feat):
    return pl.pallas_call(
        _sdtt_kernel,
        out_shape=jax.ShapeDtypeStruct((B, A, T), jnp.float32),
        in_specs=[_VMEM, _VMEM, _VMEM],
        out_specs=_VMEM,
        cost_estimate=_cost_estimate(),
    )(video_clip_feat, sentence_feat, wpack)


# --------------------------- params & forward glue ---------------------------
def init_params(key):
    ks = jax.random.split(key, 11)

    def uni(k, shape, fan_in):
        b = 1.0 / (fan_in ** 0.5)
        return jax.random.uniform(k, shape, jnp.float32, -b, b)

    return {
        # SDTT.linear (c3d_fts_dim -> embed_size), stored transposed (C3D, E)
        "lin_w": uni(ks[0], (C3D, E), C3D),
        "lin_b": uni(ks[1], (1, E), C3D),
        # PositionalEmbedding (encoder / decoder) + LayerNorm
        "pos_enc": jax.random.normal(ks[2], (1, S, E), jnp.float32),
        "pos_dec": jax.random.normal(ks[3], (1, T, E), jnp.float32),
        "ln_enc_g": jnp.ones((1, 1, E), jnp.float32),
        "ln_enc_b": jnp.zeros((1, 1, E), jnp.float32),
        "ln_dec_g": jnp.ones((1, 1, E), jnp.float32),
        "ln_dec_b": jnp.zeros((1, 1, E), jnp.float32),
        # PointerNetwork LSTMCell (gate order i,f,g,o), stored transposed (E, 4E)
        "w_ih": uni(ks[4], (E, 4 * E), E),
        "w_hh": uni(ks[5], (E, 4 * E), E),
        "b_ih": uni(ks[6], (1, 4 * E), E),
        "b_hh": uni(ks[7], (1, 4 * E), E),
        # PointerNetwork attention projections W1, W2, vt
        "w1": uni(ks[8], (E, WSZ), E),
        "w2": uni(ks[9], (E, WSZ), E),
        "vt": uni(ks[10], (1, 1, WSZ), WSZ),
    }


def pack_params(p):
    """One-time host-side packing of all parameters into a (216, 128) array."""
    wp = jnp.zeros((WPACK_ROWS, W_COLS), jnp.float32)
    wp = wp.at[R_LINW:R_LINW + C3D, 0:E].set(p["lin_w"])
    wp = wp.at[R_WIH:R_WIH + E, :].set(p["w_ih"])
    wp = wp.at[R_WHH:R_WHH + E, :].set(p["w_hh"])
    wp = wp.at[R_W1:R_W1 + E, 0:WSZ].set(p["w1"])
    wp = wp.at[R_W2:R_W2 + E, 0:WSZ].set(p["w2"])
    wp = wp.at[R_VT, 0:WSZ].set(p["vt"].reshape(WSZ))
    wp = wp.at[R_BIH, :].set(p["b_ih"].reshape(4 * E))
    wp = wp.at[R_BHH, :].set(p["b_hh"].reshape(4 * E))
    wp = wp.at[R_LINB, 0:E].set(p["lin_b"].reshape(E))
    wp = wp.at[R_PENC:R_PENC + S, 0:E].set(p["pos_enc"].reshape(S, E))
    wp = wp.at[R_PDEC:R_PDEC + T, 0:E].set(p["pos_dec"].reshape(T, E))
    wp = wp.at[R_LNEG, 0:E].set(p["ln_enc_g"].reshape(E))
    wp = wp.at[R_LNEB, 0:E].set(p["ln_enc_b"].reshape(E))
    wp = wp.at[R_LNDG, 0:E].set(p["ln_dec_g"].reshape(E))
    wp = wp.at[R_LNDB, 0:E].set(p["ln_dec_b"].reshape(E))
    return wp


@jax.jit
def sdtt_forward(wpack, video_clip_feat, sentence_feat,
                 video_clip_label, sentence_label):
    # TODO(synk): nn.TransformerEncoder/Decoder stacks and _make_mask are not
    # implemented — the reference forward discards their outputs entirely
    # (returns `src/tgt.permute(...)` instead of `out`), so results match.
    del video_clip_label, sentence_label
    return sdtt_fused_call(wpack, video_clip_feat, sentence_feat)


if __name__ == "__main__":
    key = jax.random.PRNGKey(0)
    k0, k1, k2, k3, kp = jax.random.split(key, 5)
    video_clip_feat = jax.random.normal(k0, (B, T, C3D), jnp.float32)
    sentence_feat = jax.random.normal(k1, (B, S, E), jnp.float32)
    video_clip_label = (jax.random.uniform(k2, (B, T)) > 0.5).astype(jnp.float32)
    sentence_label = (jax.random.uniform(k3, (B, S)) > 0.5).astype(jnp.float32)
    params = init_params(kp)
    wpack = pack_params(params)          # packed once, reused every call

    probs = sdtt_forward(wpack, video_clip_feat, sentence_feat,
                         video_clip_label, sentence_label)
    jax.block_until_ready(probs)
    assert probs.shape == (B, A, T) and probs.dtype == jnp.float32
    print("KERNEL_OK")
</pallas_src>

<mosaic_0001>
module attributes {stable_mosaic.version = 11 : i64} {
  func.func @_sdtt_kernel(%arg0: memref<2x8x64xf32, #tpu.memory_space<vmem>>, %arg1: memref<2x8x32xf32, #tpu.memory_space<vmem>>, %arg2: memref<216x128xf32, #tpu.memory_space<vmem>>, %arg3: memref<2x4x8xf32, #tpu.memory_space<vmem>>) attributes {dimension_semantics = [], scalar_prefetch = 0 : i64, scratch_operands = 0 : i64, tpu.core_type = #tpu.core_type<tc>} {
    %c0 = arith.constant 0 : index
    %c0_0 = arith.constant 0 : index
    %0 = vector.load %arg2[%c0, %c0_0] : memref<216x128xf32, #tpu.memory_space<vmem>>, vector<64x32xf32>
    %c195 = arith.constant 195 : index
    %c0_1 = arith.constant 0 : index
    %1 = vector.load %arg2[%c195, %c0_1] : memref<216x128xf32, #tpu.memory_space<vmem>>, vector<1x32xf32>
    %c64 = arith.constant 64 : index
    %c0_2 = arith.constant 0 : index
    %2 = vector.load %arg2[%c64, %c0_2] : memref<216x128xf32, #tpu.memory_space<vmem>>, vector<32x128xf32>
    %c96 = arith.constant 96 : index
    %c0_3 = arith.constant 0 : index
    %3 = vector.load %arg2[%c96, %c0_3] : memref<216x128xf32, #tpu.memory_space<vmem>>, vector<32x128xf32>
    %c128 = arith.constant 128 : index
    %c0_4 = arith.constant 0 : index
    %4 = vector.load %arg2[%c128, %c0_4] : memref<216x128xf32, #tpu.memory_space<vmem>>, vector<32x32xf32>
    %c160 = arith.constant 160 : index
    %c0_5 = arith.constant 0 : index
    %5 = vector.load %arg2[%c160, %c0_5] : memref<216x128xf32, #tpu.memory_space<vmem>>, vector<32x32xf32>
    %c192 = arith.constant 192 : index
    %c0_6 = arith.constant 0 : index
    %6 = vector.load %arg2[%c192, %c0_6] : memref<216x128xf32, #tpu.memory_space<vmem>>, vector<1x32xf32>
    %c193 = arith.constant 193 : index
    %c0_7 = arith.constant 0 : index
    %7 = vector.load %arg2[%c193, %c0_7] : memref<216x128xf32, #tpu.memory_space<vmem>>, vector<1x128xf32>
    %c194 = arith.constant 194 : index
    %c0_8 = arith.constant 0 : index
    %8 = vector.load %arg2[%c194, %c0_8] : memref<216x128xf32, #tpu.memory_space<vmem>>, vector<1x128xf32>
    %c196 = arith.constant 196 : index
    %c0_9 = arith.constant 0 : index
    %9 = vector.load %arg2[%c196, %c0_9] : memref<216x128xf32, #tpu.memory_space<vmem>>, vector<8x32xf32>
    %c204 = arith.constant 204 : index
    %c0_10 = arith.constant 0 : index
    %10 = vector.load %arg2[%c204, %c0_10] : memref<216x128xf32, #tpu.memory_space<vmem>>, vector<8x32xf32>
    %c212 = arith.constant 212 : index
    %c0_11 = arith.constant 0 : index
    %11 = vector.load %arg2[%c212, %c0_11] : memref<216x128xf32, #tpu.memory_space<vmem>>, vector<1x32xf32>
    %c213 = arith.constant 213 : index
    %c0_12 = arith.constant 0 : index
    %12 = vector.load %arg2[%c213, %c0_12] : memref<216x128xf32, #tpu.memory_space<vmem>>, vector<1x32xf32>
    %c214 = arith.constant 214 : index
    %c0_13 = arith.constant 0 : index
    %13 = vector.load %arg2[%c214, %c0_13] : memref<216x128xf32, #tpu.memory_space<vmem>>, vector<1x32xf32>
    %c215 = arith.constant 215 : index
    %c0_14 = arith.constant 0 : index
    %14 = vector.load %arg2[%c215, %c0_14] : memref<216x128xf32, #tpu.memory_space<vmem>>, vector<1x32xf32>
    %c0_15 = arith.constant 0 : index
    %c0_16 = arith.constant 0 : index
    %c0_17 = arith.constant 0 : index
    %15 = vector.load %arg0[%c0_15, %c0_16, %c0_17] : memref<2x8x64xf32, #tpu.memory_space<vmem>>, vector<2x8x64xf32>
    %16 = vector.shape_cast %15 : vector<2x8x64xf32> to vector<16x64xf32>
    %cst = arith.constant dense<0.000000e+00> : vector<16x32xf32>
    %17 = tpu.matmul %16, %0, %cst {dimension_numbers = #tpu.dot_dimension_numbers<[1], [0], [0], [1], [0, 0, 1, 1], [], []>} : vector<16x64xf32>, vector<64x32xf32>, vector<16x32xf32> -> vector<16x32xf32>
    %18 = vector.broadcast %1 : vector<1x32xf32> to vector<16x32xf32>
    %19 = arith.addf %17, %18 : vector<16x32xf32>
    %20 = vector.shape_cast %19 : vector<16x32xf32> to vector<2x8x32xf32>
    %c0_18 = arith.constant 0 : index
    %c0_19 = arith.constant 0 : index
    %c0_20 = arith.constant 0 : index
    %21 = vector.load %arg1[%c0_18, %c0_19, %c0_20] : memref<2x8x32xf32, #tpu.memory_space<vmem>>, vector<2x8x32xf32>
    %22 = vector.shape_cast %9 : vector<8x32xf32> to vector<1x8x32xf32>
    %23 = vector.broadcast %22 : vector<1x8x32xf32> to vector<2x8x32xf32>
    %24 = arith.addf %21, %23 : vector<2x8x32xf32>
    %cst_21 = arith.constant dense<0.000000e+00> : vector<2x8xf32>
    %25 = vector.multi_reduction <add>, %24, %cst_21 [2] : vector<2x8x32xf32> to vector<2x8xf32>
    %26 = vector.shape_cast %25 : vector<2x8xf32> to vector<2x8x1xf32>
    %cst_22 = arith.constant 3.200000e+01 : f32
    %27 = vector.broadcast %cst_22 : f32 to vector<2x8x1xf32>
    %28 = arith.divf %26, %27 : vector<2x8x1xf32>
    %29 = vector.broadcast %28 : vector<2x8x1xf32> to vector<2x8x32xf32>
    %30 = arith.subf %24, %29 : vector<2x8x32xf32>
    %31 = arith.mulf %30, %30 : vector<2x8x32xf32>
    %cst_23 = arith.constant dense<0.000000e+00> : vector<2x8xf32>
    %32 = vector.multi_reduction <add>, %31, %cst_23 [2] : vector<2x8x32xf32> to vector<2x8xf32>
    %33 = vector.shape_cast %32 : vector<2x8xf32> to vector<2x8x1xf32>
    %cst_24 = arith.constant 3.200000e+01 : f32
    %34 = vector.broadcast %cst_24 : f32 to vector<2x8x1xf32>
    %35 = arith.divf %33, %34 : vector<2x8x1xf32>
    %36 = vector.broadcast %28 : vector<2x8x1xf32> to vector<2x8x32xf32>
    %37 = arith.subf %24, %36 : vector<2x8x32xf32>
    %cst_25 = arith.constant 9.99999974E-6 : f32
    %38 = vector.broadcast %cst_25 : f32 to vector<2x8x1xf32>
    %39 = arith.addf %35, %38 : vector<2x8x1xf32>
    %40 = math.rsqrt %39 : vector<2x8x1xf32>
    %41 = vector.broadcast %40 : vector<2x8x1xf32> to vector<2x8x32xf32>
    %42 = arith.mulf %37, %41 : vector<2x8x32xf32>
    %43 = vector.shape_cast %11 : vector<1x32xf32> to vector<1x1x32xf32>
    %44 = vector.broadcast %43 : vector<1x1x32xf32> to vector<2x8x32xf32>
    %45 = arith.mulf %42, %44 : vector<2x8x32xf32>
    %46 = vector.shape_cast %12 : vector<1x32xf32> to vector<1x1x32xf32>
    %47 = vector.broadcast %46 : vector<1x1x32xf32> to vector<2x8x32xf32>
    %48 = arith.addf %45, %47 : vector<2x8x32xf32>
    %49 = vector.shape_cast %10 : vector<8x32xf32> to vector<1x8x32xf32>
    %50 = vector.broadcast %49 : vector<1x8x32xf32> to vector<2x8x32xf32>
    %51 = arith.addf %20, %50 : vector<2x8x32xf32>
    %cst_26 = arith.constant dense<0.000000e+00> : vector<2x8xf32>
    %52 = vector.multi_reduction <add>, %51, %cst_26 [2] : vector<2x8x32xf32> to vector<2x8xf32>
    %53 = vector.shape_cast %52 : vector<2x8xf32> to vector<2x8x1xf32>
    %cst_27 = arith.constant 3.200000e+01 : f32
    %54 = vector.broadcast %cst_27 : f32 to vector<2x8x1xf32>
    %55 = arith.divf %53, %54 : vector<2x8x1xf32>
    %56 = vector.broadcast %55 : vector<2x8x1xf32> to vector<2x8x32xf32>
    %57 = arith.subf %51, %56 : vector<2x8x32xf32>
    %58 = arith.mulf %57, %57 : vector<2x8x32xf32>
    %cst_28 = arith.constant dense<0.000000e+00> : vector<2x8xf32>
    %59 = vector.multi_reduction <add>, %58, %cst_28 [2] : vector<2x8x32xf32> to vector<2x8xf32>
    %60 = vector.shape_cast %59 : vector<2x8xf32> to vector<2x8x1xf32>
    %cst_29 = arith.constant 3.200000e+01 : f32
    %61 = vector.broadcast %cst_29 : f32 to vector<2x8x1xf32>
    %62 = arith.divf %60, %61 : vector<2x8x1xf32>
    %63 = vector.broadcast %55 : vector<2x8x1xf32> to vector<2x8x32xf32>
    %64 = arith.subf %51, %63 : vector<2x8x32xf32>
    %cst_30 = arith.constant 9.99999974E-6 : f32
    %65 = vector.broadcast %cst_30 : f32 to vector<2x8x1xf32>
    %66 = arith.addf %62, %65 : vector<2x8x1xf32>
    %67 = math.rsqrt %66 : vector<2x8x1xf32>
    %68 = vector.broadcast %67 : vector<2x8x1xf32> to vector<2x8x32xf32>
    %69 = arith.mulf %64, %68 : vector<2x8x32xf32>
    %70 = vector.shape_cast %13 : vector<1x32xf32> to vector<1x1x32xf32>
    %71 = vector.broadcast %70 : vector<1x1x32xf32> to vector<2x8x32xf32>
    %72 = arith.mulf %69, %71 : vector<2x8x32xf32>
    %73 = vector.shape_cast %14 : vector<1x32xf32> to vector<1x1x32xf32>
    %74 = vector.broadcast %73 : vector<1x1x32xf32> to vector<2x8x32xf32>
    %75 = arith.addf %72, %74 : vector<2x8x32xf32>
    %cst_31 = arith.constant dense<0xFF800000> : vector<2x32xf32>
    %76 = vector.multi_reduction <maximumf>, %75, %cst_31 [1] : vector<2x8x32xf32> to vector<2x32xf32>
    %cst_32 = arith.constant dense<0.000000e+00> : vector<2x32xf32>
    %77 = vector.multi_reduction <add>, %75, %cst_32 [1] : vector<2x8x32xf32> to vector<2x32xf32>
    %cst_33 = arith.constant 8.000000e+00 : f32
    %78 = vector.broadcast %cst_33 : f32 to vector<2x32xf32>
    %79 = arith.divf %77, %78 : vector<2x32xf32>
    %cst_34 = arith.constant 0.000000e+00 : f32
    %80 = vector.broadcast %cst_34 : f32 to vector<2x8xf32>
    %81 = vector.shape_cast %75 : vector<2x8x32xf32> to vector<16x32xf32>
    %cst_35 = arith.constant dense<0.000000e+00> : vector<2x128xf32>
    %82 = tpu.matmul %79, %2, %cst_35 {dimension_numbers = #tpu.dot_dimension_numbers<[1], [0], [0], [1], [0, 0, 1, 1], [], []>} : vector<2x32xf32>, vector<32x128xf32>, vector<2x128xf32> -> vector<2x128xf32>
    %83 = vector.broadcast %7 : vector<1x128xf32> to vector<2x128xf32>
    %84 = arith.addf %82, %83 : vector<2x128xf32>
    %85 = vector.broadcast %8 : vector<1x128xf32> to vector<2x128xf32>
    %86 = arith.addf %84, %85 : vector<2x128xf32>
    %87 = vector.extract_strided_slice %48 {offsets = [0, 0, 0], sizes = [2, 1, 32], strides = [1, 1, 1]} : vector<2x8x32xf32> to vector<2x1x32xf32>
    %88 = vector.shape_cast %87 : vector<2x1x32xf32> to vector<2x32xf32>
    %cst_36 = arith.constant dense<0.000000e+00> : vector<2x128xf32>
    %89 = tpu.matmul %88, %3, %cst_36 {dimension_numbers = #tpu.dot_dimension_numbers<[1], [0], [0], [1], [0, 0, 1, 1], [], []>} : vector<2x32xf32>, vector<32x128xf32>, vector<2x128xf32> -> vector<2x128xf32>
    %cst_37 = arith.constant dense<0.000000e+00> : vector<16x128xf32>
    %90 = tpu.matmul %81, %3, %cst_37 {dimension_numbers = #tpu.dot_dimension_numbers<[1], [0], [0], [1], [0, 0, 1, 1], [], []>} : vector<16x32xf32>, vector<32x128xf32>, vector<16x128xf32> -> vector<16x128xf32>
    %91 = vector.shape_cast %90 : vector<16x128xf32> to vector<2x8x128xf32>
    %cst_38 = arith.constant dense<0.000000e+00> : vector<16x32xf32>
    %92 = tpu.matmul %81, %4, %cst_38 {dimension_numbers = #tpu.dot_dimension_numbers<[1], [0], [0], [1], [0, 0, 1, 1], [], []>} : vector<16x32xf32>, vector<32x32xf32>, vector<16x32xf32> -> vector<16x32xf32>
    %93 = vector.shape_cast %92 : vector<16x32xf32> to vector<2x8x32xf32>
    %94 = vector.shape_cast %6 : vector<1x32xf32> to vector<1x1x32xf32>
    %95 = tpu.iota {dimensions = array<i32: 1>} : vector<1x8xi32>
    %96 = tpu.iota {dimensions = array<i32: 1>} : vector<1x128xi32>
    %c64_i32 = arith.constant 64 : i32
    %97 = vector.broadcast %c64_i32 : i32 to vector<1x128xi32>
    %98 = arith.cmpi sge, %96, %97 : vector<1x128xi32>
    %c96_i32 = arith.constant 96 : i32
    %99 = vector.broadcast %c96_i32 : i32 to vector<1x128xi32>
    %100 = arith.cmpi slt, %96, %99 : vector<1x128xi32>
    %101 = arith.andi %98, %100 : vector<1x128xi1>
    %cst_39 = arith.constant 1.000000e+00 : f32
    %cst_40 = arith.constant 5.000000e-01 : f32
    %102 = vector.broadcast %cst_39 : f32 to vector<1x128xf32>
    %103 = vector.broadcast %cst_40 : f32 to vector<1x128xf32>
    %104 = arith.select %101, %102, %103 : vector<1x128xi1>, vector<1x128xf32>
    %cst_41 = arith.constant 0.000000e+00 : f32
    %cst_42 = arith.constant 5.000000e-01 : f32
    %105 = vector.broadcast %cst_41 : f32 to vector<1x128xf32>
    %106 = vector.broadcast %cst_42 : f32 to vector<1x128xf32>
    %107 = arith.select %101, %105, %106 : vector<1x128xi1>, vector<1x128xf32>
    %108 = arith.addf %86, %89 : vector<2x128xf32>
    %109 = vector.broadcast %104 : vector<1x128xf32> to vector<2x128xf32>
    %110 = arith.mulf %108, %109 : vector<2x128xf32>
    %111 = math.tanh %110 : vector<2x128xf32>
    %112 = vector.broadcast %104 : vector<1x128xf32> to vector<2x128xf32>
    %113 = arith.mulf %112, %111 : vector<2x128xf32>
    %114 = vector.broadcast %107 : vector<1x128xf32> to vector<2x128xf32>
    %115 = arith.addf %113, %114 : vector<2x128xf32>
    %116 = vector.extract_strided_slice %115 {offsets = [0, 0], sizes = [2, 32], strides = [1, 1]} : vector<2x128xf32> to vector<2x32xf32>
    %117 = vector.extract_strided_slice %115 {offsets = [0, 32], sizes = [2, 32], strides = [1, 1]} : vector<2x128xf32> to vector<2x32xf32>
    %118 = vector.extract_strided_slice %115 {offsets = [0, 64], sizes = [2, 32], strides = [1, 1]} : vector<2x128xf32> to vector<2x32xf32>
    %119 = vector.extract_strided_slice %115 {offsets = [0, 96], sizes = [2, 32], strides = [1, 1]} : vector<2x128xf32> to vector<2x32xf32>
    %120 = arith.mulf %117, %76 : vector<2x32xf32>
    %121 = arith.mulf %116, %118 : vector<2x32xf32>
    %122 = arith.addf %120, %121 : vector<2x32xf32>
    %123 = math.tanh %122 : vector<2x32xf32>
    %124 = arith.mulf %119, %123 : vector<2x32xf32>
    %cst_43 = arith.constant dense<0.000000e+00> : vector<2x32xf32>
    %125 = tpu.matmul %124, %5, %cst_43 {dimension_numbers = #tpu.dot_dimension_numbers<[1], [0], [0], [1], [0, 0, 1, 1], [], []>} : vector<2x32xf32>, vector<32x32xf32>, vector<2x32xf32> -> vector<2x32xf32>
    %126 = vector.shape_cast %125 : vector<2x32xf32> to vector<2x1x32xf32>
    %127 = vector.broadcast %126 : vector<2x1x32xf32> to vector<2x8x32xf32>
    %128 = arith.addf %93, %127 : vector<2x8x32xf32>
    %129 = math.tanh %128 : vector<2x8x32xf32>
    %130 = vector.broadcast %94 : vector<1x1x32xf32> to vector<2x8x32xf32>
    %131 = arith.mulf %129, %130 : vector<2x8x32xf32>
    %cst_44 = arith.constant dense<0.000000e+00> : vector<2x8xf32>
    %132 = vector.multi_reduction <add>, %131, %cst_44 [2] : vector<2x8x32xf32> to vector<2x8xf32>
    %cst_45 = arith.constant 1.000000e-07 : f32
    %133 = vector.broadcast %cst_45 : f32 to vector<2x8xf32>
    %134 = arith.addf %132, %133 : vector<2x8xf32>
    %cst_46 = arith.constant dense<0xFF800000> : vector<2xf32>
    %135 = vector.multi_reduction <maximumf>, %134, %cst_46 [1] : vector<2x8xf32> to vector<2xf32>
    %136 = vector.shape_cast %135 : vector<2xf32> to vector<2x1xf32>
    %137 = vector.broadcast %136 : vector<2x1xf32> to vector<2x8xf32>
    %138 = arith.subf %134, %137 : vector<2x8xf32>
    %139 = math.exp %138 : vector<2x8xf32>
    %cst_47 = arith.constant dense<0.000000e+00> : vector<2xf32>
    %140 = vector.multi_reduction <add>, %139, %cst_47 [1] : vector<2x8xf32> to vector<2xf32>
    %141 = vector.shape_cast %140 : vector<2xf32> to vector<2x1xf32>
    %142 = math.log %141 : vector<2x1xf32>
    %143 = arith.addf %136, %142 : vector<2x1xf32>
    %144 = vector.broadcast %143 : vector<2x1xf32> to vector<2x8xf32>
    %145 = arith.subf %144, %134 : vector<2x8xf32>
    %cst_48 = arith.constant 5.000000e-01 : f32
    %146 = vector.broadcast %cst_48 : f32 to vector<2x8xf32>
    %147 = arith.cmpf ogt, %80, %146 : vector<2x8xf32>
    %cst_49 = arith.constant 7.000000e+00 : f32
    %148 = vector.broadcast %cst_49 : f32 to vector<2x8xf32>
    %149 = arith.select %147, %148, %145 : vector<2x8xi1>, vector<2x8xf32>
    %150 = vector.extract_strided_slice %149 {offsets = [0, 0], sizes = [1, 8], strides = [1, 1]} : vector<2x8xf32> to vector<1x8xf32>
    %c0_i32 = arith.constant 0 : i32
    %151 = vector.broadcast %c0_i32 : i32 to vector<1x8xi32>
    %152 = arith.cmpi sge, %95, %151 : vector<1x8xi32>
    %cst_50 = arith.constant 3.000000e+38 : f32
    %153 = vector.broadcast %cst_50 : f32 to vector<1x8xf32>
    %154 = arith.select %152, %150, %153 : vector<1x8xi1>, vector<1x8xf32>
    %155 = vector.shape_cast %154 : vector<1x8xf32> to vector<1x1x8xf32>
    %cst_51 = arith.constant dense<0x7F800000> : vector<1xf32>
    %156 = vector.multi_reduction <minimumf>, %155, %cst_51 [1, 2] : vector<1x1x8xf32> to vector<1xf32>
    %157 = vector.shape_cast %156 : vector<1xf32> to vector<1x1x1xf32>
    %158 = vector.extract %157[0, 0, 0] : f32 from vector<1x1x1xf32>
    %159 = vector.broadcast %158 : f32 to vector<1x8xf32>
    %160 = arith.cmpf oeq, %154, %159 : vector<1x8xf32>
    %161 = arith.andi %152, %160 : vector<1x8xi1>
    %c8_i32 = arith.constant 8 : i32
    %162 = vector.broadcast %c8_i32 : i32 to vector<1x8xi32>
    %163 = arith.select %161, %95, %162 : vector<1x8xi1>, vector<1x8xi32>
    %164 = vector.shape_cast %163 : vector<1x8xi32> to vector<1x1x8xi32>
    %cst_52 = arith.constant dense<2147483647> : vector<1xi32>
    %165 = vector.multi_reduction <minsi>, %164, %cst_52 [1, 2] : vector<1x1x8xi32> to vector<1xi32>
    %166 = vector.shape_cast %165 : vector<1xi32> to vector<1x1x1xi32>
    %167 = vector.extract %166[0, 0, 0] : i32 from vector<1x1x1xi32>
    %168 = vector.broadcast %167 : i32 to vector<1x8xi32>
    %169 = arith.cmpi slt, %95, %168 : vector<1x8xi32>
    %170 = arith.extui %169 : vector<1x8xi1> to vector<1x8xi32>
    %171 = arith.sitofp %170 : vector<1x8xi32> to vector<1x8xf32>
    %c0_i32_53 = arith.constant 0 : i32
    %c8_i32_54 = arith.constant 8 : i32
    %172 = arith.cmpi slt, %c0_i32_53, %c8_i32_54 : i32
    %c0_i32_55 = arith.constant 0 : i32
    %173 = arith.subi %167, %c0_i32_55 : i32
    %c1_i32 = arith.constant 1 : i32
    %174 = arith.addi %173, %c1_i32 : i32
    %c0_i32_56 = arith.constant 0 : i32
    %175 = arith.select %172, %174, %c0_i32_56 : i32
    %176 = vector.extract_strided_slice %149 {offsets = [1, 0], sizes = [1, 8], strides = [1, 1]} : vector<2x8xf32> to vector<1x8xf32>
    %177 = vector.broadcast %175 : i32 to vector<1x8xi32>
    %178 = arith.cmpi sge, %95, %177 : vector<1x8xi32>
    %cst_57 = arith.constant 3.000000e+38 : f32
    %179 = vector.broadcast %cst_57 : f32 to vector<1x8xf32>
    %180 = arith.select %178, %176, %179 : vector<1x8xi1>, vector<1x8xf32>
    %181 = vector.shape_cast %180 : vector<1x8xf32> to vector<1x1x8xf32>
    %cst_58 = arith.constant dense<0x7F800000> : vector<1xf32>
    %182 = vector.multi_reduction <minimumf>, %181, %cst_58 [1, 2] : vector<1x1x8xf32> to vector<1xf32>
    %183 = vector.shape_cast %182 : vector<1xf32> to vector<1x1x1xf32>
    %184 = vector.extract %183[0, 0, 0] : f32 from vector<1x1x1xf32>
    %185 = vector.broadcast %184 : f32 to vector<1x8xf32>
    %186 = arith.cmpf oeq, %180, %185 : vector<1x8xf32>
    %187 = arith.andi %178, %186 : vector<1x8xi1>
    %c8_i32_59 = arith.constant 8 : i32
    %188 = vector.broadcast %c8_i32_59 : i32 to vector<1x8xi32>
    %189 = arith.select %187, %95, %188 : vector<1x8xi1>, vector<1x8xi32>
    %190 = vector.shape_cast %189 : vector<1x8xi32> to vector<1x1x8xi32>
    %cst_60 = arith.constant dense<2147483647> : vector<1xi32>
    %191 = vector.multi_reduction <minsi>, %190, %cst_60 [1, 2] : vector<1x1x8xi32> to vector<1xi32>
    %192 = vector.shape_cast %191 : vector<1xi32> to vector<1x1x1xi32>
    %193 = vector.extract %192[0, 0, 0] : i32 from vector<1x1x1xi32>
    %194 = vector.broadcast %193 : i32 to vector<1x8xi32>
    %195 = arith.cmpi slt, %95, %194 : vector<1x8xi32>
    %196 = arith.extui %195 : vector<1x8xi1> to vector<1x8xi32>
    %197 = arith.sitofp %196 : vector<1x8xi32> to vector<1x8xf32>
    %c8_i32_61 = arith.constant 8 : i32
    %198 = arith.cmpi slt, %175, %c8_i32_61 : i32
    %199 = arith.subi %193, %175 : i32
    %c1_i32_62 = arith.constant 1 : i32
    %200 = arith.addi %199, %c1_i32_62 : i32
    %201 = arith.select %198, %200, %175 : i32
    %202 = tpu.concatenate %171, %197 in 0 : vector<1x8xf32>, vector<1x8xf32> -> vector<2x8xf32>
    %cst_63 = arith.constant 1.000000e+00 : f32
    %203 = vector.broadcast %cst_63 : f32 to vector<2x8xf32>
    %204 = arith.subf %203, %202 : vector<2x8xf32>
    %205 = vector.shape_cast %204 : vector<2x8xf32> to vector<2x8x1xf32>
    %206 = vector.broadcast %205 : vector<2x8x1xf32> to vector<2x8x128xf32>
    %207 = arith.mulf %91, %206 : vector<2x8x128xf32>
    %cst_64 = arith.constant dense<0.000000e+00> : vector<2x128xf32>
    %208 = vector.multi_reduction <add>, %207, %cst_64 [1] : vector<2x8x128xf32> to vector<2x128xf32>
    %cst_65 = arith.constant 1.250000e-01 : f32
    %209 = vector.broadcast %cst_65 : f32 to vector<2x128xf32>
    %210 = arith.mulf %208, %209 : vector<2x128xf32>
    %211 = arith.addf %86, %210 : vector<2x128xf32>
    %212 = vector.broadcast %104 : vector<1x128xf32> to vector<2x128xf32>
    %213 = arith.mulf %211, %212 : vector<2x128xf32>
    %214 = math.tanh %213 : vector<2x128xf32>
    %215 = vector.broadcast %104 : vector<1x128xf32> to vector<2x128xf32>
    %216 = arith.mulf %215, %214 : vector<2x128xf32>
    %217 = vector.broadcast %107 : vector<1x128xf32> to vector<2x128xf32>
    %218 = arith.addf %216, %217 : vector<2x128xf32>
    %219 = vector.extract_strided_slice %218 {offsets = [0, 0], sizes = [2, 32], strides = [1, 1]} : vector<2x128xf32> to vector<2x32xf32>
    %220 = vector.extract_strided_slice %218 {offsets = [0, 32], sizes = [2, 32], strides = [1, 1]} : vector<2x128xf32> to vector<2x32xf32>
    %221 = vector.extract_strided_slice %218 {offsets = [0, 64], sizes = [2, 32], strides = [1, 1]} : vector<2x128xf32> to vector<2x32xf32>
    %222 = vector.extract_strided_slice %218 {offsets = [0, 96], sizes = [2, 32], strides = [1, 1]} : vector<2x128xf32> to vector<2x32xf32>
    %223 = arith.mulf %220, %122 : vector<2x32xf32>
    %224 = arith.mulf %219, %221 : vector<2x32xf32>
    %225 = arith.addf %223, %224 : vector<2x32xf32>
    %226 = math.tanh %225 : vector<2x32xf32>
    %227 = arith.mulf %222, %226 : vector<2x32xf32>
    %cst_66 = arith.constant dense<0.000000e+00> : vector<2x32xf32>
    %228 = tpu.matmul %227, %5, %cst_66 {dimension_numbers = #tpu.dot_dimension_numbers<[1], [0], [0], [1], [0, 0, 1, 1], [], []>} : vector<2x32xf32>, vector<32x32xf32>, vector<2x32xf32> -> vector<2x32xf32>
    %229 = vector.shape_cast %228 : vector<2x32xf32> to vector<2x1x32xf32>
    %230 = vector.broadcast %229 : vector<2x1x32xf32> to vector<2x8x32xf32>
    %231 = arith.addf %93, %230 : vector<2x8x32xf32>
    %232 = math.tanh %231 : vector<2x8x32xf32>
    %233 = vector.broadcast %94 : vector<1x1x32xf32> to vector<2x8x32xf32>
    %234 = arith.mulf %232, %233 : vector<2x8x32xf32>
    %cst_67 = arith.constant dense<0.000000e+00> : vector<2x8xf32>
    %235 = vector.multi_reduction <add>, %234, %cst_67 [2] : vector<2x8x32xf32> to vector<2x8xf32>
    %cst_68 = arith.constant 1.000000e-07 : f32
    %236 = vector.broadcast %cst_68 : f32 to vector<2x8xf32>
    %237 = arith.addf %235, %236 : vector<2x8xf32>
    %cst_69 = arith.constant dense<0xFF800000> : vector<2xf32>
    %238 = vector.multi_reduction <maximumf>, %237, %cst_69 [1] : vector<2x8xf32> to vector<2xf32>
    %239 = vector.shape_cast %238 : vector<2xf32> to vector<2x1xf32>
    %240 = vector.broadcast %239 : vector<2x1xf32> to vector<2x8xf32>
    %241 = arith.subf %237, %240 : vector<2x8xf32>
    %242 = math.exp %241 : vector<2x8xf32>
    %cst_70 = arith.constant dense<0.000000e+00> : vector<2xf32>
    %243 = vector.multi_reduction <add>, %242, %cst_70 [1] : vector<2x8xf32> to vector<2xf32>
    %244 = vector.shape_cast %243 : vector<2xf32> to vector<2x1xf32>
    %245 = math.log %244 : vector<2x1xf32>
    %246 = arith.addf %239, %245 : vector<2x1xf32>
    %247 = vector.broadcast %246 : vector<2x1xf32> to vector<2x8xf32>
    %248 = arith.subf %247, %237 : vector<2x8xf32>
    %cst_71 = arith.constant 5.000000e-01 : f32
    %249 = vector.broadcast %cst_71 : f32 to vector<2x8xf32>
    %250 = arith.cmpf ogt, %202, %249 : vector<2x8xf32>
    %cst_72 = arith.constant 7.000000e+00 : f32
    %251 = vector.broadcast %cst_72 : f32 to vector<2x8xf32>
    %252 = arith.select %250, %251, %248 : vector<2x8xi1>, vector<2x8xf32>
    %253 = vector.extract_strided_slice %252 {offsets = [0, 0], sizes = [1, 8], strides = [1, 1]} : vector<2x8xf32> to vector<1x8xf32>
    %254 = vector.broadcast %201 : i32 to vector<1x8xi32>
    %255 = arith.cmpi sge, %95, %254 : vector<1x8xi32>
    %cst_73 = arith.constant 3.000000e+38 : f32
    %256 = vector.broadcast %cst_73 : f32 to vector<1x8xf32>
    %257 = arith.select %255, %253, %256 : vector<1x8xi1>, vector<1x8xf32>
    %258 = vector.shape_cast %257 : vector<1x8xf32> to vector<1x1x8xf32>
    %cst_74 = arith.constant dense<0x7F800000> : vector<1xf32>
    %259 = vector.multi_reduction <minimumf>, %258, %cst_74 [1, 2] : vector<1x1x8xf32> to vector<1xf32>
    %260 = vector.shape_cast %259 : vector<1xf32> to vector<1x1x1xf32>
    %261 = vector.extract %260[0, 0, 0] : f32 from vector<1x1x1xf32>
    %262 = vector.broadcast %261 : f32 to vector<1x8xf32>
    %263 = arith.cmpf oeq, %257, %262 : vector<1x8xf32>
    %264 = arith.andi %255, %263 : vector<1x8xi1>
    %c8_i32_75 = arith.constant 8 : i32
    %265 = vector.broadcast %c8_i32_75 : i32 to vector<1x8xi32>
    %266 = arith.select %264, %95, %265 : vector<1x8xi1>, vector<1x8xi32>
    %267 = vector.shape_cast %266 : vector<1x8xi32> to vector<1x1x8xi32>
    %cst_76 = arith.constant dense<2147483647> : vector<1xi32>
    %268 = vector.multi_reduction <minsi>, %267, %cst_76 [1, 2] : vector<1x1x8xi32> to vector<1xi32>
    %269 = vector.shape_cast %268 : vector<1xi32> to vector<1x1x1xi32>
    %270 = vector.extract %269[0, 0, 0] : i32 from vector<1x1x1xi32>
    %271 = vector.broadcast %270 : i32 to vector<1x8xi32>
    %272 = arith.cmpi slt, %95, %271 : vector<1x8xi32>
    %273 = arith.extui %272 : vector<1x8xi1> to vector<1x8xi32>
    %274 = arith.sitofp %273 : vector<1x8xi32> to vector<1x8xf32>
    %c8_i32_77 = arith.constant 8 : i32
    %275 = arith.cmpi slt, %201, %c8_i32_77 : i32
    %276 = arith.subi %270, %201 : i32
    %c1_i32_78 = arith.constant 1 : i32
    %277 = arith.addi %276, %c1_i32_78 : i32
    %278 = arith.select %275, %277, %201 : i32
    %279 = vector.extract_strided_slice %252 {offsets = [1, 0], sizes = [1, 8], strides = [1, 1]} : vector<2x8xf32> to vector<1x8xf32>
    %280 = vector.broadcast %278 : i32 to vector<1x8xi32>
    %281 = arith.cmpi sge, %95, %280 : vector<1x8xi32>
    %cst_79 = arith.constant 3.000000e+38 : f32
    %282 = vector.broadcast %cst_79 : f32 to vector<1x8xf32>
    %283 = arith.select %281, %279, %282 : vector<1x8xi1>, vector<1x8xf32>
    %284 = vector.shape_cast %283 : vector<1x8xf32> to vector<1x1x8xf32>
    %cst_80 = arith.constant dense<0x7F800000> : vector<1xf32>
    %285 = vector.multi_reduction <minimumf>, %284, %cst_80 [1, 2] : vector<1x1x8xf32> to vector<1xf32>
    %286 = vector.shape_cast %285 : vector<1xf32> to vector<1x1x1xf32>
    %287 = vector.extract %286[0, 0, 0] : f32 from vector<1x1x1xf32>
    %288 = vector.broadcast %287 : f32 to vector<1x8xf32>
    %289 = arith.cmpf oeq, %283, %288 : vector<1x8xf32>
    %290 = arith.andi %281, %289 : vector<1x8xi1>
    %c8_i32_81 = arith.constant 8 : i32
    %291 = vector.broadcast %c8_i32_81 : i32 to vector<1x8xi32>
    %292 = arith.select %290, %95, %291 : vector<1x8xi1>, vector<1x8xi32>
    %293 = vector.shape_cast %292 : vector<1x8xi32> to vector<1x1x8xi32>
    %cst_82 = arith.constant dense<2147483647> : vector<1xi32>
    %294 = vector.multi_reduction <minsi>, %293, %cst_82 [1, 2] : vector<1x1x8xi32> to vector<1xi32>
    %295 = vector.shape_cast %294 : vector<1xi32> to vector<1x1x1xi32>
    %296 = vector.extract %295[0, 0, 0] : i32 from vector<1x1x1xi32>
    %297 = vector.broadcast %296 : i32 to vector<1x8xi32>
    %298 = arith.cmpi slt, %95, %297 : vector<1x8xi32>
    %299 = arith.extui %298 : vector<1x8xi1> to vector<1x8xi32>
    %300 = arith.sitofp %299 : vector<1x8xi32> to vector<1x8xf32>
    %c8_i32_83 = arith.constant 8 : i32
    %301 = arith.cmpi slt, %278, %c8_i32_83 : i32
    %302 = arith.subi %296, %278 : i32
    %c1_i32_84 = arith.constant 1 : i32
    %303 = arith.addi %302, %c1_i32_84 : i32
    %304 = arith.select %301, %303, %278 : i32
    %305 = tpu.concatenate %274, %300 in 0 : vector<1x8xf32>, vector<1x8xf32> -> vector<2x8xf32>
    %cst_85 = arith.constant 1.000000e+00 : f32
    %306 = vector.broadcast %cst_85 : f32 to vector<2x8xf32>
    %307 = arith.subf %306, %305 : vector<2x8xf32>
    %308 = vector.shape_cast %307 : vector<2x8xf32> to vector<2x8x1xf32>
    %309 = vector.broadcast %308 : vector<2x8x1xf32> to vector<2x8x128xf32>
    %310 = arith.mulf %91, %309 : vector<2x8x128xf32>
    %cst_86 = arith.constant dense<0.000000e+00> : vector<2x128xf32>
    %311 = vector.multi_reduction <add>, %310, %cst_86 [1] : vector<2x8x128xf32> to vector<2x128xf32>
    %cst_87 = arith.constant 1.250000e-01 : f32
    %312 = vector.broadcast %cst_87 : f32 to vector<2x128xf32>
    %313 = arith.mulf %311, %312 : vector<2x128xf32>
    %314 = arith.addf %86, %313 : vector<2x128xf32>
    %315 = vector.broadcast %104 : vector<1x128xf32> to vector<2x128xf32>
    %316 = arith.mulf %314, %315 : vector<2x128xf32>
    %317 = math.tanh %316 : vector<2x128xf32>
    %318 = vector.broadcast %104 : vector<1x128xf32> to vector<2x128xf32>
    %319 = arith.mulf %318, %317 : vector<2x128xf32>
    %320 = vector.broadcast %107 : vector<1x128xf32> to vector<2x128xf32>
    %321 = arith.addf %319, %320 : vector<2x128xf32>
    %322 = vector.extract_strided_slice %321 {offsets = [0, 0], sizes = [2, 32], strides = [1, 1]} : vector<2x128xf32> to vector<2x32xf32>
    %323 = vector.extract_strided_slice %321 {offsets = [0, 32], sizes = [2, 32], strides = [1, 1]} : vector<2x128xf32> to vector<2x32xf32>
    %324 = vector.extract_strided_slice %321 {offsets = [0, 64], sizes = [2, 32], strides = [1, 1]} : vector<2x128xf32> to vector<2x32xf32>
    %325 = vector.extract_strided_slice %321 {offsets = [0, 96], sizes = [2, 32], strides = [1, 1]} : vector<2x128xf32> to vector<2x32xf32>
    %326 = arith.mulf %323, %225 : vector<2x32xf32>
    %327 = arith.mulf %322, %324 : vector<2x32xf32>
    %328 = arith.addf %326, %327 : vector<2x32xf32>
    %329 = math.tanh %328 : vector<2x32xf32>
    %330 = arith.mulf %325, %329 : vector<2x32xf32>
    %cst_88 = arith.constant dense<0.000000e+00> : vector<2x32xf32>
    %331 = tpu.matmul %330, %5, %cst_88 {dimension_numbers = #tpu.dot_dimension_numbers<[1], [0], [0], [1], [0, 0, 1, 1], [], []>} : vector<2x32xf32>, vector<32x32xf32>, vector<2x32xf32> -> vector<2x32xf32>
    %332 = vector.shape_cast %331 : vector<2x32xf32> to vector<2x1x32xf32>
    %333 = vector.broadcast %332 : vector<2x1x32xf32> to vector<2x8x32xf32>
    %334 = arith.addf %93, %333 : vector<2x8x32xf32>
    %335 = math.tanh %334 : vector<2x8x32xf32>
    %336 = vector.broadcast %94 : vector<1x1x32xf32> to vector<2x8x32xf32>
    %337 = arith.mulf %335, %336 : vector<2x8x32xf32>
    %cst_89 = arith.constant dense<0.000000e+00> : vector<2x8xf32>
    %338 = vector.multi_reduction <add>, %337, %cst_89 [2] : vector<2x8x32xf32> to vector<2x8xf32>
    %cst_90 = arith.constant 1.000000e-07 : f32
    %339 = vector.broadcast %cst_90 : f32 to vector<2x8xf32>
    %340 = arith.addf %338, %339 : vector<2x8xf32>
    %cst_91 = arith.constant dense<0xFF800000> : vector<2xf32>
    %341 = vector.multi_reduction <maximumf>, %340, %cst_91 [1] : vector<2x8xf32> to vector<2xf32>
    %342 = vector.shape_cast %341 : vector<2xf32> to vector<2x1xf32>
    %343 = vector.broadcast %342 : vector<2x1xf32> to vector<2x8xf32>
    %344 = arith.subf %340, %343 : vector<2x8xf32>
    %345 = math.exp %344 : vector<2x8xf32>
    %cst_92 = arith.constant dense<0.000000e+00> : vector<2xf32>
    %346 = vector.multi_reduction <add>, %345, %cst_92 [1] : vector<2x8xf32> to vector<2xf32>
    %347 = vector.shape_cast %346 : vector<2xf32> to vector<2x1xf32>
    %348 = math.log %347 : vector<2x1xf32>
    %349 = arith.addf %342, %348 : vector<2x1xf32>
    %350 = vector.broadcast %349 : vector<2x1xf32> to vector<2x8xf32>
    %351 = arith.subf %350, %340 : vector<2x8xf32>
    %cst_93 = arith.constant 5.000000e-01 : f32
    %352 = vector.broadcast %cst_93 : f32 to vector<2x8xf32>
    %353 = arith.cmpf ogt, %305, %352 : vector<2x8xf32>
    %cst_94 = arith.constant 7.000000e+00 : f32
    %354 = vector.broadcast %cst_94 : f32 to vector<2x8xf32>
    %355 = arith.select %353, %354, %351 : vector<2x8xi1>, vector<2x8xf32>
    %356 = vector.extract_strided_slice %355 {offsets = [0, 0], sizes = [1, 8], strides = [1, 1]} : vector<2x8xf32> to vector<1x8xf32>
    %357 = vector.broadcast %304 : i32 to vector<1x8xi32>
    %358 = arith.cmpi sge, %95, %357 : vector<1x8xi32>
    %cst_95 = arith.constant 3.000000e+38 : f32
    %359 = vector.broadcast %cst_95 : f32 to vector<1x8xf32>
    %360 = arith.select %358, %356, %359 : vector<1x8xi1>, vector<1x8xf32>
    %361 = vector.shape_cast %360 : vector<1x8xf32> to vector<1x1x8xf32>
    %cst_96 = arith.constant dense<0x7F800000> : vector<1xf32>
    %362 = vector.multi_reduction <minimumf>, %361, %cst_96 [1, 2] : vector<1x1x8xf32> to vector<1xf32>
    %363 = vector.shape_cast %362 : vector<1xf32> to vector<1x1x1xf32>
    %364 = vector.extract %363[0, 0, 0] : f32 from vector<1x1x1xf32>
    %365 = vector.broadcast %364 : f32 to vector<1x8xf32>
    %366 = arith.cmpf oeq, %360, %365 : vector<1x8xf32>
    %367 = arith.andi %358, %366 : vector<1x8xi1>
    %c8_i32_97 = arith.constant 8 : i32
    %368 = vector.broadcast %c8_i32_97 : i32 to vector<1x8xi32>
    %369 = arith.select %367, %95, %368 : vector<1x8xi1>, vector<1x8xi32>
    %370 = vector.shape_cast %369 : vector<1x8xi32> to vector<1x1x8xi32>
    %cst_98 = arith.constant dense<2147483647> : vector<1xi32>
    %371 = vector.multi_reduction <minsi>, %370, %cst_98 [1, 2] : vector<1x1x8xi32> to vector<1xi32>
    %372 = vector.shape_cast %371 : vector<1xi32> to vector<1x1x1xi32>
    %373 = vector.extract %372[0, 0, 0] : i32 from vector<1x1x1xi32>
    %374 = vector.broadcast %373 : i32 to vector<1x8xi32>
    %375 = arith.cmpi slt, %95, %374 : vector<1x8xi32>
    %376 = arith.extui %375 : vector<1x8xi1> to vector<1x8xi32>
    %377 = arith.sitofp %376 : vector<1x8xi32> to vector<1x8xf32>
    %c8_i32_99 = arith.constant 8 : i32
    %378 = arith.cmpi slt, %304, %c8_i32_99 : i32
    %379 = arith.subi %373, %304 : i32
    %c1_i32_100 = arith.constant 1 : i32
    %380 = arith.addi %379, %c1_i32_100 : i32
    %381 = arith.select %378, %380, %304 : i32
    %382 = vector.extract_strided_slice %355 {offsets = [1, 0], sizes = [1, 8], strides = [1, 1]} : vector<2x8xf32> to vector<1x8xf32>
    %383 = vector.broadcast %381 : i32 to vector<1x8xi32>
    %384 = arith.cmpi sge, %95, %383 : vector<1x8xi32>
    %cst_101 = arith.constant 3.000000e+38 : f32
    %385 = vector.broadcast %cst_101 : f32 to vector<1x8xf32>
    %386 = arith.select %384, %382, %385 : vector<1x8xi1>, vector<1x8xf32>
    %387 = vector.shape_cast %386 : vector<1x8xf32> to vector<1x1x8xf32>
    %cst_102 = arith.constant dense<0x7F800000> : vector<1xf32>
    %388 = vector.multi_reduction <minimumf>, %387, %cst_102 [1, 2] : vector<1x1x8xf32> to vector<1xf32>
    %389 = vector.shape_cast %388 : vector<1xf32> to vector<1x1x1xf32>
    %390 = vector.extract %389[0, 0, 0] : f32 from vector<1x1x1xf32>
    %391 = vector.broadcast %390 : f32 to vector<1x8xf32>
    %392 = arith.cmpf oeq, %386, %391 : vector<1x8xf32>
    %393 = arith.andi %384, %392 : vector<1x8xi1>
    %c8_i32_103 = arith.constant 8 : i32
    %394 = vector.broadcast %c8_i32_103 : i32 to vector<1x8xi32>
    %395 = arith.select %393, %95, %394 : vector<1x8xi1>, vector<1x8xi32>
    %396 = vector.shape_cast %395 : vector<1x8xi32> to vector<1x1x8xi32>
    %cst_104 = arith.constant dense<2147483647> : vector<1xi32>
    %397 = vector.multi_reduction <minsi>, %396, %cst_104 [1, 2] : vector<1x1x8xi32> to vector<1xi32>
    %398 = vector.shape_cast %397 : vector<1xi32> to vector<1x1x1xi32>
    %399 = vector.extract %398[0, 0, 0] : i32 from vector<1x1x1xi32>
    %400 = vector.broadcast %399 : i32 to vector<1x8xi32>
    %401 = arith.cmpi slt, %95, %400 : vector<1x8xi32>
    %402 = arith.extui %401 : vector<1x8xi1> to vector<1x8xi32>
    %403 = arith.sitofp %402 : vector<1x8xi32> to vector<1x8xf32>
    %404 = tpu.concatenate %377, %403 in 0 : vector<1x8xf32>, vector<1x8xf32> -> vector<2x8xf32>
    %cst_105 = arith.constant 1.000000e+00 : f32
    %405 = vector.broadcast %cst_105 : f32 to vector<2x8xf32>
    %406 = arith.subf %405, %404 : vector<2x8xf32>
    %407 = vector.shape_cast %406 : vector<2x8xf32> to vector<2x8x1xf32>
    %408 = vector.broadcast %407 : vector<2x8x1xf32> to vector<2x8x128xf32>
    %409 = arith.mulf %91, %408 : vector<2x8x128xf32>
    %cst_106 = arith.constant dense<0.000000e+00> : vector<2x128xf32>
    %410 = vector.multi_reduction <add>, %409, %cst_106 [1] : vector<2x8x128xf32> to vector<2x128xf32>
    %cst_107 = arith.constant 1.250000e-01 : f32
    %411 = vector.broadcast %cst_107 : f32 to vector<2x128xf32>
    %412 = arith.mulf %410, %411 : vector<2x128xf32>
    %413 = arith.addf %86, %412 : vector<2x128xf32>
    %414 = vector.broadcast %104 : vector<1x128xf32> to vector<2x128xf32>
    %415 = arith.mulf %413, %414 : vector<2x128xf32>
    %416 = math.tanh %415 : vector<2x128xf32>
    %417 = vector.broadcast %104 : vector<1x128xf32> to vector<2x128xf32>
    %418 = arith.mulf %417, %416 : vector<2x128xf32>
    %419 = vector.broadcast %107 : vector<1x128xf32> to vector<2x128xf32>
    %420 = arith.addf %418, %419 : vector<2x128xf32>
    %421 = vector.extract_strided_slice %420 {offsets = [0, 0], sizes = [2, 32], strides = [1, 1]} : vector<2x128xf32> to vector<2x32xf32>
    %422 = vector.extract_strided_slice %420 {offsets = [0, 32], sizes = [2, 32], strides = [1, 1]} : vector<2x128xf32> to vector<2x32xf32>
    %423 = vector.extract_strided_slice %420 {offsets = [0, 64], sizes = [2, 32], strides = [1, 1]} : vector<2x128xf32> to vector<2x32xf32>
    %424 = vector.extract_strided_slice %420 {offsets = [0, 96], sizes = [2, 32], strides = [1, 1]} : vector<2x128xf32> to vector<2x32xf32>
    %425 = arith.mulf %422, %328 : vector<2x32xf32>
    %426 = arith.mulf %421, %423 : vector<2x32xf32>
    %427 = arith.addf %425, %426 : vector<2x32xf32>
    %428 = math.tanh %427 : vector<2x32xf32>
    %429 = arith.mulf %424, %428 : vector<2x32xf32>
    %cst_108 = arith.constant dense<0.000000e+00> : vector<2x32xf32>
    %430 = tpu.matmul %429, %5, %cst_108 {dimension_numbers = #tpu.dot_dimension_numbers<[1], [0], [0], [1], [0, 0, 1, 1], [], []>} : vector<2x32xf32>, vector<32x32xf32>, vector<2x32xf32> -> vector<2x32xf32>
    %431 = vector.shape_cast %430 : vector<2x32xf32> to vector<2x1x32xf32>
    %432 = vector.broadcast %431 : vector<2x1x32xf32> to vector<2x8x32xf32>
    %433 = arith.addf %93, %432 : vector<2x8x32xf32>
    %434 = math.tanh %433 : vector<2x8x32xf32>
    %435 = vector.broadcast %94 : vector<1x1x32xf32> to vector<2x8x32xf32>
    %436 = arith.mulf %434, %435 : vector<2x8x32xf32>
    %cst_109 = arith.constant dense<0.000000e+00> : vector<2x8xf32>
    %437 = vector.multi_reduction <add>, %436, %cst_109 [2] : vector<2x8x32xf32> to vector<2x8xf32>
    %cst_110 = arith.constant 1.000000e-07 : f32
    %438 = vector.broadcast %cst_110 : f32 to vector<2x8xf32>
    %439 = arith.addf %437, %438 : vector<2x8xf32>
    %cst_111 = arith.constant dense<0xFF800000> : vector<2xf32>
    %440 = vector.multi_reduction <maximumf>, %439, %cst_111 [1] : vector<2x8xf32> to vector<2xf32>
    %441 = vector.shape_cast %440 : vector<2xf32> to vector<2x1xf32>
    %442 = vector.broadcast %441 : vector<2x1xf32> to vector<2x8xf32>
    %443 = arith.subf %439, %442 : vector<2x8xf32>
    %444 = math.exp %443 : vector<2x8xf32>
    %cst_112 = arith.constant dense<0.000000e+00> : vector<2xf32>
    %445 = vector.multi_reduction <add>, %444, %cst_112 [1] : vector<2x8xf32> to vector<2xf32>
    %446 = vector.shape_cast %445 : vector<2xf32> to vector<2x1xf32>
    %447 = math.log %446 : vector<2x1xf32>
    %448 = arith.addf %441, %447 : vector<2x1xf32>
    %449 = vector.broadcast %448 : vector<2x1xf32> to vector<2x8xf32>
    %450 = arith.subf %449, %439 : vector<2x8xf32>
    %cst_113 = arith.constant 5.000000e-01 : f32
    %451 = vector.broadcast %cst_113 : f32 to vector<2x8xf32>
    %452 = arith.cmpf ogt, %404, %451 : vector<2x8xf32>
    %cst_114 = arith.constant 7.000000e+00 : f32
    %453 = vector.broadcast %cst_114 : f32 to vector<2x8xf32>
    %454 = arith.select %452, %453, %450 : vector<2x8xi1>, vector<2x8xf32>
    %455 = vector.shape_cast %149 : vector<2x8xf32> to vector<2x1x8xf32>
    %456 = vector.shape_cast %252 : vector<2x8xf32> to vector<2x1x8xf32>
    %457 = vector.shape_cast %355 : vector<2x8xf32> to vector<2x1x8xf32>
    %458 = vector.shape_cast %454 : vector<2x8xf32> to vector<2x1x8xf32>
    %459 = tpu.concatenate %455, %456, %457, %458 in 1 : vector<2x1x8xf32>, vector<2x1x8xf32>, vector<2x1x8xf32>, vector<2x1x8xf32> -> vector<2x4x8xf32>
    %c0_115 = arith.constant 0 : index
    %c0_116 = arith.constant 0 : index
    %c0_117 = arith.constant 0 : index
    %460 = vector.load %arg3[%c0_115, %c0_116, %c0_117] : memref<2x4x8xf32, #tpu.memory_space<vmem>>, vector<2x4x8xf32>
    tpu.vector_store %arg3[%c0_115, %c0_116, %c0_117], %459 {strides = array<i32>} : memref<2x4x8xf32, #tpu.memory_space<vmem>>, vector<2x4x8xf32>,
    return
  }
}

</mosaic_0001>

<llo_original>
// kernel: sdtt_forward.1
$region0: #{sdtt_forward.1}
  #allocation0 [shape = 'u32[]', space=smem, size = 0x4, offset = 0x4, fixed_abs, tag = 'smem constant byte address 0x4 - core index']
  #allocation1 [shape = 'u32[144,128]{1,0:T(1,128)}', space=vmem, size = 0x12000, scoped, tag = 'internal scratch']
  %s0 = inlined_call_operand.hbm [shape: f32[2,8,64], index: 0, kind: input, shape index: {}]
  %s1 = inlined_call_operand.hbm [shape: f32[2,8,32], index: 1, kind: input, shape index: {}]
  %s2 = inlined_call_operand.hbm [shape: f32[216,128], index: 2, kind: input, shape index: {}]
  %s3 = inlined_call_operand.hbm [shape: f32[2,4,8], index: 3, kind: output, shape index: {}]
  %s4 = sld [smem:[#allocation0]]
  $region34: #{sdtt_forward.1} parent=0
    _
  %s6 = ssub.s32 1, %s4
  %s7 = scalar_select 0, %s6, %s4
  $region1: #{sdtt_forward.1} parent=0
    #allocation2 [shape = 'u8[8192]{0}', space=vmem, size = 0x2000, scoped, tag = 'input window, operand 0, single buffered']
    #allocation3 [shape = 's32[1]{0}', space=sflag, size = 0x4, scoped, tag = 'scoped memory for sdtt_forward.1']
    #allocation4 [shape = 's32[1]{0}', space=sflag, size = 0x4, scoped, tag = 'scoped memory for sdtt_forward.1']
    #allocation5 [shape = 'u8[8192]{0}', space=vmem, size = 0x2000, scoped, tag = 'input window, operand 1, single buffered']
    #allocation6 [shape = 's32[1]{0}', space=sflag, size = 0x4, scoped, tag = 'scoped memory for sdtt_forward.1']
    #allocation7 [shape = 'u8[110592]{0}', space=vmem, size = 0x1b000, scoped, tag = 'input window, operand 2, single buffered']
    #allocation8 [shape = 'u8[4096]{0}', space=vmem, size = 0x1000, scoped, tag = 'output window, operand 0, single buffered']
    %8 = vsyncpa [#allocation3], 0
    %9 = vsyncpa [#allocation6], 0
    %10 = vsyncpa [#allocation4], 0
    // Predicated region
    $region2: #{sdtt_forward.1} parent=1 // pred_check
      _
    $region3: #{sdtt_forward.1} parent=1 // pred_check_branch
      %12 = sbr.rel (0) target = $region5
    $region4: #{sdtt_forward.1} parent=1 // pred_region
      %s14 = ssub.s32 256, 256
      %15 = vsyncadd [#allocation3], %s14
      %s16 = sshll.u32 [#allocation2], 4
      %s17 = int_to_ptr.vmem [resolvable:$true] %s16
      %22 = dma.hbm_to_vmem [thread:$0]  %s0, 256, %s17, [#allocation3], 128, 128, 8
    $region5: #{sdtt_forward.1} parent=1 // pred_fallthru
      _
    // Predicated region
    $region6: #{sdtt_forward.1} parent=1 // pred_check
      _
    $region7: #{sdtt_forward.1} parent=1 // pred_check_branch
      %24 = sbr.rel (0) target = $region9
    $region8: #{sdtt_forward.1} parent=1 // pred_region
      %s26 = ssub.s32 256, 256
      %27 = vsyncadd [#allocation6], %s26
      %s28 = sshll.u32 [#allocation5], 4
      %s29 = int_to_ptr.vmem [resolvable:$true] %s28
      %34 = dma.hbm_to_vmem [thread:$0]  %s1, 256, %s29, [#allocation6], 128, 128, 8
    $region9: #{sdtt_forward.1} parent=1 // pred_fallthru
      _
    // Predicated region
    $region10: #{sdtt_forward.1} parent=1 // pred_check
      _
    $region11: #{sdtt_forward.1} parent=1 // pred_check_branch
      %36 = sbr.rel (0) target = $region13
    $region12: #{sdtt_forward.1} parent=1 // pred_region
      %s38 = ssub.s32 3456, 3456
      %39 = vsyncadd [#allocation6], %s38
      %s40 = sshll.u32 [#allocation7], 4
      %s41 = int_to_ptr.vmem [resolvable:$true] %s40
      %46 = dma.hbm_to_vmem [thread:$0]  %s2, 3456, %s41, [#allocation6], 128, 128, 8
    $region13: #{sdtt_forward.1} parent=1 // pred_fallthru
      _
    // Predicated region
    $region14: #{sdtt_forward.1} parent=1 // pred_check
      _
    $region15: #{sdtt_forward.1} parent=1 // pred_check_branch
      %48 = sbr.rel (0) target = $region17
    $region16: #{sdtt_forward.1} parent=1 // pred_region
      %49 = dma.done [#allocation3], 256
    $region17: #{sdtt_forward.1} parent=1 // pred_fallthru
      _
    // Predicated region
    $region18: #{sdtt_forward.1} parent=1 // pred_check
      _
    $region19: #{sdtt_forward.1} parent=1 // pred_check_branch
      %51 = sbr.rel (0) target = $region21
    $region20: #{sdtt_forward.1} parent=1 // pred_region
      %52 = dma.done [#allocation6], 256
    $region21: #{sdtt_forward.1} parent=1 // pred_fallthru
      _
    // Predicated region
    $region22: #{sdtt_forward.1} parent=1 // pred_check
      _
    $region23: #{sdtt_forward.1} parent=1 // pred_check_branch
      %54 = sbr.rel (0) target = $region25
    $region24: #{sdtt_forward.1} parent=1 // pred_region
      %55 = dma.done [#allocation6], 3456
    $region25: #{sdtt_forward.1} parent=1 // pred_fallthru
      _
    %v56 = vld [vmem:[#allocation7] sm:$0xff]
    %v57 = vld [vmem:[#allocation7 + $0x8] sm:$0xff]
    %v58 = vld [vmem:[#allocation7 + $0x10] sm:$0xff]
    %v59 = vld [vmem:[#allocation7 + $0x18] sm:$0xff]
    %v60 = vld [vmem:[#allocation7 + $0x20] sm:$0xff]
    %v61 = vld [vmem:[#allocation7 + $0x28] sm:$0xff]
    %v62 = vld [vmem:[#allocation7 + $0x30] sm:$0xff]
    %v63 = vld [vmem:[#allocation7 + $0x38] sm:$0xff]
    %v64 = vld [vmem:[#allocation7 + $0xc3] sm:$0x1]
    %v65 = vld [vmem:[#allocation7 + $0x40] sm:$0xff]
    %v66 = vld [vmem:[#allocation7 + $0x48] sm:$0xff]
    %v67 = vld [vmem:[#allocation7 + $0x50] sm:$0xff]
    %v68 = vld [vmem:[#allocation7 + $0x58] sm:$0xff]
    %v69 = vld [vmem:[#allocation7 + $0x60] sm:$0xff]
    %v70 = vld [vmem:[#allocation7 + $0x68] sm:$0xff]
    %v71 = vld [vmem:[#allocation7 + $0x70] sm:$0xff]
    %v72 = vld [vmem:[#allocation7 + $0x78] sm:$0xff]
    %v73 = vld [vmem:[#allocation7 + $0x80] sm:$0xff]
    %v74 = vld [vmem:[#allocation7 + $0x88] sm:$0xff]
    %v75 = vld [vmem:[#allocation7 + $0x90] sm:$0xff]
    %v76 = vld [vmem:[#allocation7 + $0x98] sm:$0xff]
    %v77 = vld [vmem:[#allocation7 + $0xa0] sm:$0xff]
    %v78 = vld [vmem:[#allocation7 + $0xa8] sm:$0xff]
    %v79 = vld [vmem:[#allocation7 + $0xb0] sm:$0xff]
    %v80 = vld [vmem:[#allocation7 + $0xb8] sm:$0xff]
    %v81 = vld [vmem:[#allocation7 + $0xc0] sm:$0x1]
    %v82 = vld [vmem:[#allocation7 + $0xc1] sm:$0x1]
    %v83 = vld [vmem:[#allocation7 + $0xc2] sm:$0x1]
    %v84 = vld [vmem:[#allocation7 + $0xc4] sm:$0xff]
    %v85 = vld [vmem:[#allocation7 + $0xcc] sm:$0xff]
    %v86 = vld [vmem:[#allocation7 + $0xd4] sm:$0x1]
    %v87 = vld [vmem:[#allocation7 + $0xd5] sm:$0x1]
    %v88 = vld [vmem:[#allocation7 + $0xd6] sm:$0x1]
    %v89 = vld [vmem:[#allocation7 + $0xd7] sm:$0x1]
    %v90 = vld [vmem:[#allocation2] sm:$0xff]
    %v91 = vld [vmem:[#allocation2 + $0x8] sm:$0xff]
    %v92 = vlaneseq
    %v93 = vshrl.u32 %v92, 7
    %v94 = vsub.s32 0, %v93
    %v95 = vrot.slane %v64, %v94
    %vm96 = vcmask 523264
    %v98 = vsel %vm96, %v90, 0
    %v101 = vsel %vm96, %v91, 0
    %103 = vmatprep.subr.mxu0 0.0
    %104 = vmatpush1.msra.mxu0 %v56
    %105 = vmatprep.subr.mxu0 0.0
    %106 = vmatpush1.msra.mxu0 %v57
    %107 = vmatprep.subr.mxu0 0.0
    %108 = vmatpush1.msra.mxu0 %v58
    %109 = vmatprep.subr.mxu0 0.0
    %110 = vmatpush1.msra.mxu0 %v59
    %111 = vmatprep.subr.mxu0 0.0
    %112 = vmatpush1.msra.mxu0 %v60
    %113 = vmatprep.subr.mxu0 0.0
    %114 = vmatpush1.msra.mxu0 %v61
    %115 = vmatprep.subr.mxu0 0.0
    %116 = vmatpush1.msra.mxu0 %v62
    %117 = vmatprep.subr.mxu0 0.0
    %118 = vmatpush1.msra.mxu0 %v63
    %119 = vmatprep.subr.mxu0 0.0
    %120 = vmatpush1.msra.mxu0 0.0
    %121 = vmatprep.subr.mxu0 0.0
    %122 = vmatpush1.msra.mxu0 0.0
    %123 = vmatprep.subr.mxu0 0.0
    %124 = vmatpush1.msra.mxu0 0.0
    %125 = vmatprep.subr.mxu0 0.0
    %126 = vmatpush1.msra.mxu0 0.0
    %127 = vmatprep.subr.mxu0 0.0
    %128 = vmatpush1.msra.mxu0 0.0
    %129 = vmatprep.subr.mxu0 0.0
    %130 = vmatpush1.msra.mxu0 0.0
    %131 = vmatprep.subr.mxu0 0.0
    %132 = vmatpush1.msra.mxu0 0.0
    %133 = vmatprep.subr.mxu0 0.0
    %134 = vmatpush1.msra.mxu0 0.0
    %135 = vmatprep.subr.mxu0 0.0
    %136 = vmatpush1.msra.mxu0 0.0
    %137 = vmatprep.subr.mxu0 0.0
    %138 = vmatpush1.msra.mxu0 0.0
    %139 = vmatprep.subr.mxu0 0.0
    %140 = vmatpush1.msra.mxu0 0.0
    %141 = vmatprep.subr.mxu0 0.0
    %142 = vmatpush1.msra.mxu0 0.0
    %143 = vmatprep.subr.mxu0 0.0
    %144 = vmatpush1.msra.mxu0 0.0
    %145 = vmatprep.subr.mxu0 0.0
    %146 = vmatpush1.msra.mxu0 0.0
    %147 = vmatprep.subr.mxu0 0.0
    %148 = vmatpush1.msra.mxu0 0.0
    %149 = vmatprep.subr.mxu0 0.0
    %150 = vmatpush1.msra.mxu0 0.0
    %151 = vmatprep.subr.mxu0 0.0
    %152 = vmatpush1.msra.mxu0 0.0
    %153 = vmatprep.subr.mxu0 0.0
    %154 = vmatpush1.msra.mxu0 0.0
    %155 = vmatprep.subr.mxu0 0.0
    %156 = vmatpush1.msra.mxu0 0.0
    %157 = vmatprep.subr.mxu0 0.0
    %158 = vmatpush1.msra.mxu0 0.0
    %159 = vmatprep.subr.mxu0 0.0
    %160 = vmatpush1.msra.mxu0 0.0
    %161 = vmatprep.subr.mxu0 0.0
    %162 = vmatpush1.msra.mxu0 0.0
    %163 = vmatprep.subr.mxu0 0.0
    %164 = vmatpush1.msra.mxu0 0.0
    %165 = vmatprep.subr.mxu0 0.0
    %166 = vmatpush1.msra.mxu0 0.0
    %167 = vmatprep.mubr.f32.mxu0 0.0
    %168 = vmatmul.mubr.f32.gmra.mrb[0].mxu0 %v98
    %v169 = vpop.f32.mrb[0].mxu0
    %v170 = vadd.f32 %v95, %v169
    %v171 = vpop.f32.mrb[0].mxu0
    %172 = vmatprep.mubr.f32.mxu0 0.0
    %173 = vmatmul.mubr.f32.gmra.mrb[0].mxu0 %v101
    %v174 = vpop.f32.mrb[0].mxu0
    %v175 = vadd.f32 %v95, %v174
    %v176 = vpop.f32.mrb[0].mxu0
    %177 = vdwg.mxu0
    %v178 = vld [vmem:[#allocation5] sm:$0xff]
    %v179 = vld [vmem:[#allocation5 + $0x8] sm:$0xff]
    %v180 = vadd.f32 %v178, %v84
    %v181 = vadd.f32 %v179, %v84
    %vm182 = vcmask 261120
    %v183 = vsel %vm182, %v180, 0.0
    %184 = vadd.xlane.f32.xlu0 %v183
    %v185 = vpop.xlane.xlu0 %184
    %v186 = vsel %vm182, %v181, 0.0
    %187 = vadd.xlane.f32.xlu0 %v186
    %v188 = vpop.xlane.xlu0 %187
    %v189 = vrcp.pop 32.0
    %v190 = vmul.f32 %v185, %v189
    %v191 = vmul.f32 %v188, %v189
    %v192 = vsub.f32 %v180, %v190
    %v193 = vsub.f32 %v181, %v191
    %v194 = vmul.f32 %v192, %v192
    %v195 = vmul.f32 %v193, %v193
    %v196 = vsel %vm182, %v194, 0.0
    %197 = vadd.xlane.f32.xlu0 %v196
    %v198 = vpop.xlane.xlu0 %197
    %v199 = vsel %vm182, %v195, 0.0
    %200 = vadd.xlane.f32.xlu0 %v199
    %v201 = vpop.xlane.xlu0 %200
    %v202 = vmul.f32 %v198, %v189
    %v203 = vmul.f32 %v201, %v189
    %v204 = vadd.f32 %v202, 1e-05
    %v205 = vadd.f32 %v203, 1e-05
    %v206 = vrsqrt.pop %v204
    %v207 = vrsqrt.pop %v205
    %v208 = vmul.f32 %v192, %v206
    %v209 = vmul.f32 %v193, %v207
    %v210 = vlaneseq
    %v211 = vshrl.u32 %v210, 7
    %v212 = vsub.s32 0, %v211
    %v213 = vrot.slane %v86, %v212
    %v214 = vmul.f32 %v208, %v213
    %v215 = vmul.f32 %v209, %v213
    %v216 = vlaneseq
    %v217 = vshrl.u32 %v216, 7
    %v218 = vsub.s32 0, %v217
    %v219 = vrot.slane %v87, %v218
    %v220 = vadd.f32 %v214, %v219
    %v221 = vadd.f32 %v215, %v219
    %v222 = vadd.f32 %v170, %v85
    %v223 = vadd.f32 %v175, %v85
    %v224 = vsel %vm182, %v222, 0.0
    %225 = vadd.xlane.f32.xlu0 %v224
    %v226 = vpop.xlane.xlu0 %225
    %v227 = vsel %vm182, %v223, 0.0
    %228 = vadd.xlane.f32.xlu0 %v227
    %v229 = vpop.xlane.xlu0 %228
    %v230 = vmul.f32 %v226, %v189
    %v231 = vmul.f32 %v229, %v189
    %v232 = vsub.f32 %v222, %v230
    %v233 = vsub.f32 %v223, %v231
    %v234 = vmul.f32 %v232, %v232
    %v235 = vmul.f32 %v233, %v233
    %v236 = vsel %vm182, %v234, 0.0
    %237 = vadd.xlane.f32.xlu0 %v236
    %v238 = vpop.xlane.xlu0 %237
    %v239 = vsel %vm182, %v235, 0.0
    %240 = vadd.xlane.f32.xlu0 %v239
    %v241 = vpop.xlane.xlu0 %240
    %v242 = vmul.f32 %v238, %v189
    %v243 = vmul.f32 %v241, %v189
    %v244 = vadd.f32 %v242, 1e-05
    %v245 = vadd.f32 %v243, 1e-05
    %v246 = vrsqrt.pop %v244
    %v247 = vrsqrt.pop %v245
    %v248 = vmul.f32 %v232, %v246
    %v249 = vmul.f32 %v233, %v247
    %v250 = vlaneseq
    %v251 = vshrl.u32 %v250, 7
    %v252 = vsub.s32 0, %v251
    %v253 = vrot.slane %v88, %v252
    %v254 = vmul.f32 %v248, %v253
    %v255 = vmul.f32 %v249, %v253
    %v256 = vlaneseq
    %v257 = vshrl.u32 %v256, 7
    %v258 = vsub.s32 0, %v257
    %v259 = vrot.slane %v89, %v258
    %v260 = vadd.f32 %v254, %v259
    %v261 = vadd.f32 %v255, %v259
    %v262 = vsel %vm182, %v260, -inf
    %v263 = vrot.slane %v262, 4
    %v264 = vmax.f32 %v262, %v263
    %v265 = vrot.slane %v264, 2
    %v266 = vmax.f32 %v264, %v265
    %v267 = vrot.slane %v266, 1
    %v268 = vmax.f32 %v266, %v267
    %v269 = vsel %vm182, %v261, -inf
    %v270 = vrot.slane %v269, 4
    %v271 = vmax.f32 %v269, %v270
    %v272 = vrot.slane %v271, 2
    %v273 = vmax.f32 %v271, %v272
    %v274 = vrot.slane %v273, 1
    %v275 = vmax.f32 %v273, %v274
    %v276 = vsel %vm182, %v260, 0.0
    %v277 = vrot.slane %v276, 4
    %v278 = vadd.f32 %v276, %v277
    %v279 = vrot.slane %v278, 2
    %v280 = vadd.f32 %v278, %v279
    %v281 = vrot.slane %v280, 1
    %v282 = vadd.f32 %v280, %v281
    %v283 = vsel %vm182, %v261, 0.0
    %v284 = vrot.slane %v283, 4
    %v285 = vadd.f32 %v283, %v284
    %v286 = vrot.slane %v285, 2
    %v287 = vadd.f32 %v285, %v286
    %v288 = vrot.slane %v287, 1
    %v289 = vadd.f32 %v287, %v288
    %v290 = vrcp.pop 8.0
    %v291 = vmul.f32 %v282, %v290
    %v292 = vmul.f32 %v289, %v290
    %v293 = vlaneseq
    %v294 = vshrl.u32 %v293, 7
    %v295 = vsub.s32 0, %v294
    %v296 = vrot.slane %v82, %v295
    %vm299 = vcmask 1041409
    %v300 = vsel %vm299, %v292, %v291
    %v301 = vsel %vm182, %v300, 0
    %303 = vmatprep.subr.mxu0 0.0
    %304 = vmatpush1.msra.mxu0 %v65
    %305 = vmatprep.subr.mxu0 0.0
    %306 = vmatpush1.msra.mxu0 %v66
    %307 = vmatprep.subr.mxu0 0.0
    %308 = vmatpush1.msra.mxu0 %v67
    %309 = vmatprep.subr.mxu0 0.0
    %310 = vmatpush1.msra.mxu0 %v68
    %311 = vmatprep.subr.mxu0 0.0
    %312 = vmatpush1.msra.mxu0 0.0
    %313 = vmatprep.subr.mxu0 0.0
    %314 = vmatpush1.msra.mxu0 0.0
    %315 = vmatprep.subr.mxu0 0.0
    %316 = vmatpush1.msra.mxu0 0.0
    %317 = vmatprep.subr.mxu0 0.0
    %318 = vmatpush1.msra.mxu0 0.0
    %319 = vmatprep.subr.mxu0 0.0
    %320 = vmatpush1.msra.mxu0 0.0
    %321 = vmatprep.subr.mxu0 0.0
    %322 = vmatpush1.msra.mxu0 0.0
    %323 = vmatprep.subr.mxu0 0.0
    %324 = vmatpush1.msra.mxu0 0.0
    %325 = vmatprep.subr.mxu0 0.0
    %326 = vmatpush1.msra.mxu0 0.0
    %327 = vmatprep.subr.mxu0 0.0
    %328 = vmatpush1.msra.mxu0 0.0
    %329 = vmatprep.subr.mxu0 0.0
    %330 = vmatpush1.msra.mxu0 0.0
    %331 = vmatprep.subr.mxu0 0.0
    %332 = vmatpush1.msra.mxu0 0.0
    %333 = vmatprep.subr.mxu0 0.0
    %334 = vmatpush1.msra.mxu0 0.0
    %335 = vmatprep.subr.mxu0 0.0
    %336 = vmatpush1.msra.mxu0 0.0
    %337 = vmatprep.subr.mxu0 0.0
    %338 = vmatpush1.msra.mxu0 0.0
    %339 = vmatprep.subr.mxu0 0.0
    %340 = vmatpush1.msra.mxu0 0.0
    %341 = vmatprep.subr.mxu0 0.0
    %342 = vmatpush1.msra.mxu0 0.0
    %343 = vmatprep.subr.mxu0 0.0
    %344 = vmatpush1.msra.mxu0 0.0
    %345 = vmatprep.subr.mxu0 0.0
    %346 = vmatpush1.msra.mxu0 0.0
    %347 = vmatprep.subr.mxu0 0.0
    %348 = vmatpush1.msra.mxu0 0.0
    %349 = vmatprep.subr.mxu0 0.0
    %350 = vmatpush1.msra.mxu0 0.0
    %351 = vmatprep.subr.mxu0 0.0
    %352 = vmatpush1.msra.mxu0 0.0
    %353 = vmatprep.subr.mxu0 0.0
    %354 = vmatpush1.msra.mxu0 0.0
    %355 = vmatprep.subr.mxu0 0.0
    %356 = vmatpush1.msra.mxu0 0.0
    %357 = vmatprep.subr.mxu0 0.0
    %358 = vmatpush1.msra.mxu0 0.0
    %359 = vmatprep.subr.mxu0 0.0
    %360 = vmatpush1.msra.mxu0 0.0
    %361 = vmatprep.subr.mxu0 0.0
    %362 = vmatpush1.msra.mxu0 0.0
    %363 = vmatprep.subr.mxu0 0.0
    %364 = vmatpush1.msra.mxu0 0.0
    %365 = vmatprep.subr.mxu0 0.0
    %366 = vmatpush1.msra.mxu0 0.0
    %367 = vmatprep.mubr.f32.mxu0 0.0
    %368 = vmatmul.mubr.f32.gmra.mrb[0].mxu0 %v301
    %v369 = vpop.f32.mrb[0].mxu0
    %v370 = vadd.f32 %v296, %v369
    %v371 = vpop.f32.mrb[0].mxu0
    %372 = vdwg.mxu0
    %v373 = vlaneseq
    %v374 = vshrl.u32 %v373, 7
    %v375 = vsub.s32 0, %v374
    %v376 = vrot.slane %v83, %v375
    %v377 = vadd.f32 %v370, %v376
    %v380 = vrot.slane %v221, 7
    %v381 = vsel %vm299, %v380, %v220
    %v382 = vsel %vm182, %v381, 0
    %384 = vmatprep.subr.mxu0 0.0
    %385 = vmatpush1.msra.mxu0 %v69
    %386 = vmatprep.subr.mxu0 0.0
    %387 = vmatpush1.msra.mxu0 %v70
    %388 = vmatprep.subr.mxu0 0.0
    %389 = vmatpush1.msra.mxu0 %v71
    %390 = vmatprep.subr.mxu0 0.0
    %391 = vmatpush1.msra.mxu0 %v72
    %392 = vmatprep.subr.mxu0 0.0
    %393 = vmatpush1.msra.mxu0 0.0
    %394 = vmatprep.subr.mxu0 0.0
    %395 = vmatpush1.msra.mxu0 0.0
    %396 = vmatprep.subr.mxu0 0.0
    %397 = vmatpush1.msra.mxu0 0.0
    %398 = vmatprep.subr.mxu0 0.0
    %399 = vmatpush1.msra.mxu0 0.0
    %400 = vmatprep.subr.mxu0 0.0
    %401 = vmatpush1.msra.mxu0 0.0
    %402 = vmatprep.subr.mxu0 0.0
    %403 = vmatpush1.msra.mxu0 0.0
    %404 = vmatprep.subr.mxu0 0.0
    %405 = vmatpush1.msra.mxu0 0.0
    %406 = vmatprep.subr.mxu0 0.0
    %407 = vmatpush1.msra.mxu0 0.0
    %408 = vmatprep.subr.mxu0 0.0
    %409 = vmatpush1.msra.mxu0 0.0
    %410 = vmatprep.subr.mxu0 0.0
    %411 = vmatpush1.msra.mxu0 0.0
    %412 = vmatprep.subr.mxu0 0.0
    %413 = vmatpush1.msra.mxu0 0.0
    %414 = vmatprep.subr.mxu0 0.0
    %415 = vmatpush1.msra.mxu0 0.0
    %416 = vmatprep.subr.mxu0 0.0
    %417 = vmatpush1.msra.mxu0 0.0
    %418 = vmatprep.subr.mxu0 0.0
    %419 = vmatpush1.msra.mxu0 0.0
    %420 = vmatprep.subr.mxu0 0.0
    %421 = vmatpush1.msra.mxu0 0.0
    %422 = vmatprep.subr.mxu0 0.0
    %423 = vmatpush1.msra.mxu0 0.0
    %424 = vmatprep.subr.mxu0 0.0
    %425 = vmatpush1.msra.mxu0 0.0
    %426 = vmatprep.subr.mxu0 0.0
    %427 = vmatpush1.msra.mxu0 0.0
    %428 = vmatprep.subr.mxu0 0.0
    %429 = vmatpush1.msra.mxu0 0.0
    %430 = vmatprep.subr.mxu0 0.0
    %431 = vmatpush1.msra.mxu0 0.0
    %432 = vmatprep.subr.mxu0 0.0
    %433 = vmatpush1.msra.mxu0 0.0
    %434 = vmatprep.subr.mxu0 0.0
    %435 = vmatpush1.msra.mxu0 0.0
    %436 = vmatprep.subr.mxu0 0.0
    %437 = vmatpush1.msra.mxu0 0.0
    %438 = vmatprep.subr.mxu0 0.0
    %439 = vmatpush1.msra.mxu0 0.0
    %440 = vmatprep.subr.mxu0 0.0
    %441 = vmatpush1.msra.mxu0 0.0
    %442 = vmatprep.subr.mxu0 0.0
    %443 = vmatpush1.msra.mxu0 0.0
    %444 = vmatprep.subr.mxu0 0.0
    %445 = vmatpush1.msra.mxu0 0.0
    %446 = vmatprep.subr.mxu0 0.0
    %447 = vmatpush1.msra.mxu0 0.0
    %448 = vmatprep.mubr.f32.mxu0 0.0
    %449 = vmatmul.mubr.f32.gmra.mrb[0].mxu0 %v382
    %v450 = vpop.f32.mrb[0].mxu0
    %v451 = vadd.f32 0.0, %v450
    %v452 = vpop.f32.mrb[0].mxu0
    %453 = vdwg.mxu0
    %v455 = vsel %vm182, %v260, 0
    %v458 = vsel %vm182, %v261, 0
    %460 = vmatprep.subr.mxu0 0.0
    %461 = vmatpush1.msra.mxu0 %v69
    %462 = vmatprep.subr.mxu0 0.0
    %463 = vmatpush1.msra.mxu0 %v70
    %464 = vmatprep.subr.mxu0 0.0
    %465 = vmatpush1.msra.mxu0 %v71
    %466 = vmatprep.subr.mxu0 0.0
    %467 = vmatpush1.msra.mxu0 %v72
    %468 = vmatprep.subr.mxu0 0.0
    %469 = vmatpush1.msra.mxu0 0.0
    %470 = vmatprep.subr.mxu0 0.0
    %471 = vmatpush1.msra.mxu0 0.0
    %472 = vmatprep.subr.mxu0 0.0
    %473 = vmatpush1.msra.mxu0 0.0
    %474 = vmatprep.subr.mxu0 0.0
    %475 = vmatpush1.msra.mxu0 0.0
    %476 = vmatprep.subr.mxu0 0.0
    %477 = vmatpush1.msra.mxu0 0.0
    %478 = vmatprep.subr.mxu0 0.0
    %479 = vmatpush1.msra.mxu0 0.0
    %480 = vmatprep.subr.mxu0 0.0
    %481 = vmatpush1.msra.mxu0 0.0
    %482 = vmatprep.subr.mxu0 0.0
    %483 = vmatpush1.msra.mxu0 0.0
    %484 = vmatprep.subr.mxu0 0.0
    %485 = vmatpush1.msra.mxu0 0.0
    %486 = vmatprep.subr.mxu0 0.0
    %487 = vmatpush1.msra.mxu0 0.0
    %488 = vmatprep.subr.mxu0 0.0
    %489 = vmatpush1.msra.mxu0 0.0
    %490 = vmatprep.subr.mxu0 0.0
    %491 = vmatpush1.msra.mxu0 0.0
    %492 = vmatprep.subr.mxu0 0.0
    %493 = vmatpush1.msra.mxu0 0.0
    %494 = vmatprep.subr.mxu0 0.0
    %495 = vmatpush1.msra.mxu0 0.0
    %496 = vmatprep.subr.mxu0 0.0
    %497 = vmatpush1.msra.mxu0 0.0
    %498 = vmatprep.subr.mxu0 0.0
    %499 = vmatpush1.msra.mxu0 0.0
    %500 = vmatprep.subr.mxu0 0.0
    %501 = vmatpush1.msra.mxu0 0.0
    %502 = vmatprep.subr.mxu0 0.0
    %503 = vmatpush1.msra.mxu0 0.0
    %504 = vmatprep.subr.mxu0 0.0
    %505 = vmatpush1.msra.mxu0 0.0
    %506 = vmatprep.subr.mxu0 0.0
    %507 = vmatpush1.msra.mxu0 0.0
    %508 = vmatprep.subr.mxu0 0.0
    %509 = vmatpush1.msra.mxu0 0.0
    %510 = vmatprep.subr.mxu0 0.0
    %511 = vmatpush1.msra.mxu0 0.0
    %512 = vmatprep.subr.mxu0 0.0
    %513 = vmatpush1.msra.mxu0 0.0
    %514 = vmatprep.subr.mxu0 0.0
    %515 = vmatpush1.msra.mxu0 0.0
    %516 = vmatprep.subr.mxu0 0.0
    %517 = vmatpush1.msra.mxu0 0.0
    %518 = vmatprep.subr.mxu0 0.0
    %519 = vmatpush1.msra.mxu0 0.0
    %520 = vmatprep.subr.mxu0 0.0
    %521 = vmatpush1.msra.mxu0 0.0
    %522 = vmatprep.subr.mxu0 0.0
    %523 = vmatpush1.msra.mxu0 0.0
    %524 = vmatprep.mubr.f32.mxu0 0.0
    %525 = vmatmul.mubr.f32.gmra.mrb[0].mxu0 %v455
    %v526 = vpop.f32.mrb[0].mxu0
    %v527 = vadd.f32 0.0, %v526
    %v528 = vpop.f32.mrb[0].mxu0
    %529 = vmatprep.mubr.f32.mxu0 0.0
    %530 = vmatmul.mubr.f32.gmra.mrb[0].mxu0 %v458
    %v531 = vpop.f32.mrb[0].mxu0
    %v532 = vadd.f32 0.0, %v531
    %v533 = vpop.f32.mrb[0].mxu0
    %534 = vdwg.mxu0
    %535 = vmatprep.subr.mxu0 0.0
    %536 = vmatpush1.msra.mxu0 %v73
    %537 = vmatprep.subr.mxu0 0.0
    %538 = vmatpush1.msra.mxu0 %v74
    %539 = vmatprep.subr.mxu0 0.0
    %540 = vmatpush1.msra.mxu0 %v75
    %541 = vmatprep.subr.mxu0 0.0
    %542 = vmatpush1.msra.mxu0 %v76
    %543 = vmatprep.subr.mxu0 0.0
    %544 = vmatpush1.msra.mxu0 0.0
    %545 = vmatprep.subr.mxu0 0.0
    %546 = vmatpush1.msra.mxu0 0.0
    %547 = vmatprep.subr.mxu0 0.0
    %548 = vmatpush1.msra.mxu0 0.0
    %549 = vmatprep.subr.mxu0 0.0
    %550 = vmatpush1.msra.mxu0 0.0
    %551 = vmatprep.subr.mxu0 0.0
    %552 = vmatpush1.msra.mxu0 0.0
    %553 = vmatprep.subr.mxu0 0.0
    %554 = vmatpush1.msra.mxu0 0.0
    %555 = vmatprep.subr.mxu0 0.0
    %556 = vmatpush1.msra.mxu0 0.0
    %557 = vmatprep.subr.mxu0 0.0
    %558 = vmatpush1.msra.mxu0 0.0
    %559 = vmatprep.subr.mxu0 0.0
    %560 = vmatpush1.msra.mxu0 0.0
    %561 = vmatprep.subr.mxu0 0.0
    %562 = vmatpush1.msra.mxu0 0.0
    %563 = vmatprep.subr.mxu0 0.0
    %564 = vmatpush1.msra.mxu0 0.0
    %565 = vmatprep.subr.mxu0 0.0
    %566 = vmatpush1.msra.mxu0 0.0
    %567 = vmatprep.subr.mxu0 0.0
    %568 = vmatpush1.msra.mxu0 0.0
    %569 = vmatprep.subr.mxu0 0.0
    %570 = vmatpush1.msra.mxu0 0.0
    %571 = vmatprep.subr.mxu0 0.0
    %572 = vmatpush1.msra.mxu0 0.0
    %573 = vmatprep.subr.mxu0 0.0
    %574 = vmatpush1.msra.mxu0 0.0
    %575 = vmatprep.subr.mxu0 0.0
    %576 = vmatpush1.msra.mxu0 0.0
    %577 = vmatprep.subr.mxu0 0.0
    %578 = vmatpush1.msra.mxu0 0.0
    %579 = vmatprep.subr.mxu0 0.0
    %580 = vmatpush1.msra.mxu0 0.0
    %581 = vmatprep.subr.mxu0 0.0
    %582 = vmatpush1.msra.mxu0 0.0
    %583 = vmatprep.subr.mxu0 0.0
    %584 = vmatpush1.msra.mxu0 0.0
    %585 = vmatprep.subr.mxu0 0.0
    %586 = vmatpush1.msra.mxu0 0.0
    %587 = vmatprep.subr.mxu0 0.0
    %588 = vmatpush1.msra.mxu0 0.0
    %589 = vmatprep.subr.mxu0 0.0
    %590 = vmatpush1.msra.mxu0 0.0
    %591 = vmatprep.subr.mxu0 0.0
    %592 = vmatpush1.msra.mxu0 0.0
    %593 = vmatprep.subr.mxu0 0.0
    %594 = vmatpush1.msra.mxu0 0.0
    %595 = vmatprep.subr.mxu0 0.0
    %596 = vmatpush1.msra.mxu0 0.0
    %597 = vmatprep.subr.mxu0 0.0
    %598 = vmatpush1.msra.mxu0 0.0
    %599 = vmatprep.mubr.f32.mxu0 0.0
    %600 = vmatmul.mubr.f32.gmra.mrb[0].mxu0 %v455
    %v601 = vpop.f32.mrb[0].mxu0
    %v602 = vadd.f32 0.0, %v601
    %v603 = vpop.f32.mrb[0].mxu0
    %604 = vmatprep.mubr.f32.mxu0 0.0
    %605 = vmatmul.mubr.f32.gmra.mrb[0].mxu0 %v458
    %v606 = vpop.f32.mrb[0].mxu0
    %v607 = vadd.f32 0.0, %v606
    %v608 = vpop.f32.mrb[0].mxu0
    %609 = vdwg.mxu0
    %v610 = vlaneseq
    %v611 = vand.u32 %v610, 127
    %vm612 = vcmp.ge.s32.totalorder %v611, 64
    %vm613 = vcmp.lt.s32.totalorder %v611, 96
    %vm614 = vmand %vm612, %vm613
    %v615 = vsel %vm614, 1.0, 0.5
    %v616 = vsel %vm614, 0.0, 0.5
    %v617 = vadd.f32 %v377, %v451
    %v618 = vmul.f32 %v617, %v615
    %v619 = vtanh.pop %v618
    %v620 = vmul.f32 %v615, %v619
    %v621 = vadd.f32 %v620, %v616
    %v624 = vsel %vm299, %v275, %v268
    %625 = vrot.lane.b32.xlu0 %v624, 32
    %v626 = vpop.permute.xlu0 %625
    %v628 = vmul.f32 %v621, %v626
    %630 = vrot.lane.b32.xlu0 %v621, 64
    %v631 = vpop.permute.xlu0 %630
    %v633 = vmul.f32 %v621, %v631
    %635 = vrot.lane.b32.xlu0 %v633, 32
    %v636 = vpop.permute.xlu0 %635
    %v638 = vadd.f32 %v628, %v636
    %v639 = vtanh.pop %v638
    %641 = vrot.lane.b32.xlu0 %v639, 64
    %v642 = vpop.permute.xlu0 %641
    %v644 = vmul.f32 %v621, %v642
    %646 = vrot.lane.b32.xlu0 %v644, 32
    %v647 = vpop.permute.xlu0 %646
    %v648 = vsel %vm182, %v647, 0
    %650 = vmatprep.subr.mxu0 0.0
    %651 = vmatpush1.msra.mxu0 %v77
    %652 = vmatprep.subr.mxu0 0.0
    %653 = vmatpush1.msra.mxu0 %v78
    %654 = vmatprep.subr.mxu0 0.0
    %655 = vmatpush1.msra.mxu0 %v79
    %656 = vmatprep.subr.mxu0 0.0
    %657 = vmatpush1.msra.mxu0 %v80
    %658 = vmatprep.subr.mxu0 0.0
    %659 = vmatpush1.msra.mxu0 0.0
    %660 = vmatprep.subr.mxu0 0.0
    %661 = vmatpush1.msra.mxu0 0.0
    %662 = vmatprep.subr.mxu0 0.0
    %663 = vmatpush1.msra.mxu0 0.0
    %664 = vmatprep.subr.mxu0 0.0
    %665 = vmatpush1.msra.mxu0 0.0
    %666 = vmatprep.subr.mxu0 0.0
    %667 = vmatpush1.msra.mxu0 0.0
    %668 = vmatprep.subr.mxu0 0.0
    %669 = vmatpush1.msra.mxu0 0.0
    %670 = vmatprep.subr.mxu0 0.0
    %671 = vmatpush1.msra.mxu0 0.0
    %672 = vmatprep.subr.mxu0 0.0
    %673 = vmatpush1.msra.mxu0 0.0
    %674 = vmatprep.subr.mxu0 0.0
    %675 = vmatpush1.msra.mxu0 0.0
    %676 = vmatprep.subr.mxu0 0.0
    %677 = vmatpush1.msra.mxu0 0.0
    %678 = vmatprep.subr.mxu0 0.0
    %679 = vmatpush1.msra.mxu0 0.0
    %680 = vmatprep.subr.mxu0 0.0
    %681 = vmatpush1.msra.mxu0 0.0
    %682 = vmatprep.subr.mxu0 0.0
    %683 = vmatpush1.msra.mxu0 0.0
    %684 = vmatprep.subr.mxu0 0.0
    %685 = vmatpush1.msra.mxu0 0.0
    %686 = vmatprep.subr.mxu0 0.0
    %687 = vmatpush1.msra.mxu0 0.0
    %688 = vmatprep.subr.mxu0 0.0
    %689 = vmatpush1.msra.mxu0 0.0
    %690 = vmatprep.subr.mxu0 0.0
    %691 = vmatpush1.msra.mxu0 0.0
    %692 = vmatprep.subr.mxu0 0.0
    %693 = vmatpush1.msra.mxu0 0.0
    %694 = vmatprep.subr.mxu0 0.0
    %695 = vmatpush1.msra.mxu0 0.0
    %696 = vmatprep.subr.mxu0 0.0
    %697 = vmatpush1.msra.mxu0 0.0
    %698 = vmatprep.subr.mxu0 0.0
    %699 = vmatpush1.msra.mxu0 0.0
    %700 = vmatprep.subr.mxu0 0.0
    %701 = vmatpush1.msra.mxu0 0.0
    %702 = vmatprep.subr.mxu0 0.0
    %703 = vmatpush1.msra.mxu0 0.0
    %704 = vmatprep.subr.mxu0 0.0
    %705 = vmatpush1.msra.mxu0 0.0
    %706 = vmatprep.subr.mxu0 0.0
    %707 = vmatpush1.msra.mxu0 0.0
    %708 = vmatprep.subr.mxu0 0.0
    %709 = vmatpush1.msra.mxu0 0.0
    %710 = vmatprep.subr.mxu0 0.0
    %711 = vmatpush1.msra.mxu0 0.0
    %712 = vmatprep.subr.mxu0 0.0
    %713 = vmatpush1.msra.mxu0 0.0
    %714 = vmatprep.mubr.f32.mxu0 0.0
    %715 = vmatmul.mubr.f32.gmra.mrb[0].mxu0 %v648
    %v716 = vpop.f32.mrb[0].mxu0
    %v717 = vadd.f32 0.0, %v716
    %v718 = vpop.f32.mrb[0].mxu0
    %719 = vdwg.mxu0
    %v722 = vunpack.c.l.s4 1966171168
    %v723 = vunpack.c.0.s8 %v722
    %v724 = vlaneseq
    %v725 = vshrl.u32 %v724, 7
    %v726 = vsub.s32 %v723, %v725
    %v727 = vrot.slane %v717, %v726
    %v728 = vcombine.high %v727, %v727
    %v730 = vunpack.c.l.s4 1966171168
    %v731 = vunpack.c.0.s8 %v730
    %v732 = vlaneseq
    %v733 = vshrl.u32 %v732, 7
    %v734 = vsub.s32 %v731, %v733
    %v735 = vrot.slane %v727, %v734
    %v737 = vunpack.c.l.s4 1966171168
    %v738 = vunpack.c.0.s8 %v737
    %v739 = vlaneseq
    %v740 = vshrl.u32 %v739, 7
    %v741 = vsub.s32 %v738, %v740
    %v742 = vrot.slane %v728, %v741
    %v743 = vlaneseq
    %v744 = vshrl.u32 %v743, 7
    %v745 = vsub.s32 0, %v744
    %v746 = vrot.slane %v735, %v745
    %v747 = vlaneseq
    %v748 = vshrl.u32 %v747, 7
    %v749 = vsub.s32 0, %v748
    %v750 = vrot.slane %v742, %v749
    %v753 = vadd.f32 %v602, %v746
    %v754 = vadd.f32 %v607, %v750
    %v755 = vtanh.pop %v753
    %v756 = vtanh.pop %v754
    %v757 = vlaneseq
    %v758 = vshrl.u32 %v757, 7
    %v759 = vsub.s32 0, %v758
    %v760 = vrot.slane %v81, %v759
    %v761 = vmul.f32 %v755, %v760
    %v762 = vmul.f32 %v756, %v760
    %v763 = vsel %vm182, %v761, 0.0
    %764 = vadd.xlane.f32.xlu0 %v763
    %v765 = vpop.xlane.xlu0 %764
    %v766 = vsel %vm182, %v762, 0.0
    %767 = vadd.xlane.f32.xlu0 %v766
    %v768 = vpop.xlane.xlu0 %767
    %v769 = vadd.f32 %v765, 1e-07
    %v770 = vadd.f32 %v768, 1e-07
    %v773 = vlaneseq
    %v774 = vshrl.u32 %v773, 7
    %v775 = vsub.s32 %v611, %v774
    %v776 = vrot.slane %v769, %v775
    %v777 = vlaneseq
    %v778 = vshrl.u32 %v777, 7
    %v779 = vsub.s32 %v611, %v778
    %v780 = vrot.slane %v770, %v779
    %v781 = vsel %vm299, %v780, %v776
    %vm783 = vcmask 58368
    %v784 = vsel %vm783, %v781, -inf
    %785 = vmax.xlane.f32.xlu0 %v784
    %v786 = vpop.xlane.xlu0 %785
    %v788 = vlaneseq
    %v789 = vshrl.u32 %v788, 7
    %v790 = vsub.s32 0, %v789
    %v791 = vrot.slane %v786, %v790
    %v792 = vlaneseq
    %v793 = vshrl.u32 %v792, 7
    %v794 = vsub.s32 1, %v793
    %v795 = vrot.slane %v786, %v794
    %v798 = vsub.f32 %v769, %v791
    %v799 = vsub.f32 %v770, %v795
    %v800 = vmul.f32 %v798, 1.442695
    %v801 = vpow.pop %v800
    %v802 = vmul.f32 %v799, 1.442695
    %v803 = vpow.pop %v802
    %806 = vset.pattern.permute.xlu0 0
    %807 = vperm.xlu0 %806, %v801
    %v808 = vpop.permute.xlu0 %807
    %809 = vset.pattern.permute.xlu0 0
    %810 = vperm.xlu0 %809, %v803
    %v811 = vpop.permute.xlu0 %810
    %v812 = vlaneseq
    %v813 = vshrl.u32 %v812, 7
    %v814 = vsub.s32 %v611, %v813
    %v815 = vrot.slane %v808, %v814
    %v816 = vlaneseq
    %v817 = vshrl.u32 %v816, 7
    %v818 = vsub.s32 %v611, %v817
    %v819 = vrot.slane %v811, %v818
    %v820 = vsel %vm299, %v819, %v815
    %v822 = vsel %vm783, %v820, 0.0
    %823 = vadd.xlane.f32.xlu0 %v822
    %v824 = vpop.xlane.xlu0 %823
    %v825 = vlog2.pop %v824
    %v826 = vmul.f32 %v825, 0.6931472
    %v827 = vadd.f32 %v786, %v826
    %v828 = vsub.f32 %v827, %v781
    %vm829 = vcmp.gt.f32.partialorder 0.0, 0.5
    %v830 = vsel %vm829, 7.0, %v828
    %vm831 = vcmp.ge.s32.totalorder %v611, 0
    %v832 = vsel %vm831, %v830, 3e+38
    %vm833 = vcmask 57344
    %v834 = vsel %vm833, %v832, inf
    %835 = vmin.xlane.f32.xlu0 %v834
    %v836 = vpop.xlane.xlu0 %835
    %v837 = vrot.slane %v836, 4
    %v838 = vmin.f32 %v836, %v837
    %v839 = vrot.slane %v838, 2
    %v840 = vmin.f32 %v838, %v839
    %v841 = vrot.slane %v840, 1
    %v842 = vmin.f32 %v840, %v841
    %s843 = vtos %v842
    %v844 = vstv %s843
    %vm845 = vcmp.eq.f32.partialorder %v832, %v844
    %vm846 = vmand %vm831, %vm845
    %v847 = vsel %vm846, %v611, 8
    %v848 = vsel %vm833, %v847, 2147483647
    %v849 = vand.u32 %v848, 65535
    %v850 = vshra.s32 %v848, 16
    %v851 = vcvt.s32.f32 %v849
    %v852 = vcvt.s32.f32 %v850
    %853 = vmin.xlane.f32.xlu0 %v852
    %v854 = vpop.xlane.xlu0 %853
    %vm855 = vcmp.eq.f32.partialorder %v852, %v854
    %v856 = vsel %vm855, %v851, inf
    %857 = vmin.xlane.f32.xlu0 %v856
    %v858 = vpop.xlane.xlu0 %857
    %v859 = vcvt.f32.s32 %v858
    %v860 = vcvt.f32.s32 %v854
    %v861 = vshll.u32 %v860, 16
    %v862 = vadd.s32 %v861, %v859
    %v863 = vrot.slane %v862, 4
    %vm864 = vcmp.lt.s32.totalorder %v862, %v863
    %v865 = vsel %vm864, %v862, %v863
    %v866 = vrot.slane %v865, 2
    %vm867 = vcmp.lt.s32.totalorder %v865, %v866
    %v868 = vsel %vm867, %v865, %v866
    %v869 = vrot.slane %v868, 1
    %vm870 = vcmp.lt.s32.totalorder %v868, %v869
    %v871 = vsel %vm870, %v868, %v869
    %s872 = vtos %v871
    %v873 = vstv %s872
    %vm874 = vcmp.lt.s32.totalorder %v611, %v873
    %v875 = vsel %vm874, 1, 0
    %v876 = vcvt.s32.f32 %v875
    %s877 = sadd.s32 %s872, 1
    %v878 = vstv %s877
    %vm879 = vcmp.ge.s32.totalorder %v611, %v878
    %v880 = vsel %vm879, %v830, 3e+38
    %vm881 = vcmask 58369
    %v882 = vsel %vm881, %v880, inf
    %883 = vmin.xlane.f32.xlu0 %v882
    %v884 = vpop.xlane.xlu0 %883
    %v885 = vrot.slane %v884, 4
    %v886 = vmin.f32 %v884, %v885
    %v887 = vrot.slane %v886, 2
    %v888 = vmin.f32 %v886, %v887
    %v889 = vrot.slane %v888, 1
    %v890 = vmin.f32 %v888, %v889
    %s891 = vtos %v890
    %v892 = vstv %s891
    %vm893 = vcmp.eq.f32.partialorder %v880, %v892
    %vm894 = vmand %vm879, %vm893
    %v895 = vsel %vm894, %v611, 8
    %v896 = vsel %vm881, %v895, 2147483647
    %v897 = vand.u32 %v896, 65535
    %v898 = vshra.s32 %v896, 16
    %v899 = vcvt.s32.f32 %v897
    %v900 = vcvt.s32.f32 %v898
    %901 = vmin.xlane.f32.xlu0 %v900
    %v902 = vpop.xlane.xlu0 %901
    %vm903 = vcmp.eq.f32.partialorder %v900, %v902
    %v904 = vsel %vm903, %v899, inf
    %905 = vmin.xlane.f32.xlu0 %v904
    %v906 = vpop.xlane.xlu0 %905
    %v907 = vcvt.f32.s32 %v906
    %v908 = vcvt.f32.s32 %v902
    %v909 = vshll.u32 %v908, 16
    %v910 = vadd.s32 %v909, %v907
    %v911 = vrot.slane %v910, 4
    %vm912 = vcmp.lt.s32.totalorder %v910, %v911
    %v913 = vsel %vm912, %v910, %v911
    %v914 = vrot.slane %v913, 2
    %vm915 = vcmp.lt.s32.totalorder %v913, %v914
    %v916 = vsel %vm915, %v913, %v914
    %v917 = vrot.slane %v916, 1
    %vm918 = vcmp.lt.s32.totalorder %v916, %v917
    %v919 = vsel %vm918, %v916, %v917
    %s920 = vtos %v919
    %v921 = vstv %s920
    %vm922 = vcmp.lt.s32.totalorder %v611, %v921
    %v923 = vsel %vm922, 1, 0
    %v924 = vcvt.s32.f32 %v923
    %p925 = scmp.lt.s32.totalorder %s877, 8
    %s926 = ssub.s32 %s920, %s877
    %s927 = sadd.s32 %s926, 1
    %s928 = scalar_select %p925, %s927, %s877
    %vm929 = vcmask 1040384
    %v930 = vsel %vm929, %v876, %v924
    %v931 = vsub.f32 1.0, %v930
    %v932 = vlaneseq
    %v933 = vshrl.u32 %v932, 7
    %v934 = vsub.s32 0, %v933
    %v935 = vrot.slane %v931, %v934
    %937 = vbcast.lane.b32.xlu0 %v935, 256
    %v938 = vpop.permute.xlu0 %937
    %v939 = vlaneseq
    %v940 = vshrl.u32 %v939, 7
    %v941 = vsub.s32 1, %v940
    %v942 = vrot.slane %v931, %v941
    %944 = vbcast.lane.b32.xlu0 %v942, 256
    %v945 = vpop.permute.xlu0 %944
    %v946 = vmul.f32 %v527, %v938
    %v947 = vmul.f32 %v532, %v945
    %v948 = vrot.slane %v946, 4
    %v949 = vadd.f32 %v946, %v948
    %v950 = vrot.slane %v949, 2
    %v951 = vadd.f32 %v949, %v950
    %v952 = vrot.slane %v951, 1
    %v953 = vadd.f32 %v951, %v952
    %v954 = vrot.slane %v947, 4
    %v955 = vadd.f32 %v947, %v954
    %v956 = vrot.slane %v955, 2
    %v957 = vadd.f32 %v955, %v956
    %v958 = vrot.slane %v957, 1
    %v959 = vadd.f32 %v957, %v958
    %v960 = vmul.f32 %v953, 0.125
    %v961 = vmul.f32 %v959, 0.125
    %v964 = vsel %vm299, %v961, %v960
    %v966 = vadd.f32 %v377, %v964
    %v967 = vmul.f32 %v966, %v615
    %v968 = vtanh.pop %v967
    %v969 = vmul.f32 %v615, %v968
    %v970 = vadd.f32 %v969, %v616
    %v971 = vmul.f32 %v970, %v638
    %973 = vrot.lane.b32.xlu0 %v970, 64
    %v974 = vpop.permute.xlu0 %973
    %v976 = vmul.f32 %v970, %v974
    %978 = vrot.lane.b32.xlu0 %v976, 32
    %v979 = vpop.permute.xlu0 %978
    %v981 = vadd.f32 %v971, %v979
    %v982 = vtanh.pop %v981
    %984 = vrot.lane.b32.xlu0 %v982, 64
    %v985 = vpop.permute.xlu0 %984
    %v987 = vmul.f32 %v970, %v985
    %989 = vrot.lane.b32.xlu0 %v987, 32
    %v990 = vpop.permute.xlu0 %989
    %v991 = vsel %vm182, %v990, 0
    %993 = vmatprep.subr.mxu0 0.0
    %994 = vmatpush1.msra.mxu0 %v77
    %995 = vmatprep.subr.mxu0 0.0
    %996 = vmatpush1.msra.mxu0 %v78
    %997 = vmatprep.subr.mxu0 0.0
    %998 = vmatpush1.msra.mxu0 %v79
    %999 = vmatprep.subr.mxu0 0.0
    %1000 = vmatpush1.msra.mxu0 %v80
    %1001 = vmatprep.subr.mxu0 0.0
    %1002 = vmatpush1.msra.mxu0 0.0
    %1003 = vmatprep.subr.mxu0 0.0
    %1004 = vmatpush1.msra.mxu0 0.0
    %1005 = vmatprep.subr.mxu0 0.0
    %1006 = vmatpush1.msra.mxu0 0.0
    %1007 = vmatprep.subr.mxu0 0.0
    %1008 = vmatpush1.msra.mxu0 0.0
    %1009 = vmatprep.subr.mxu0 0.0
    %1010 = vmatpush1.msra.mxu0 0.0
    %1011 = vmatprep.subr.mxu0 0.0
    %1012 = vmatpush1.msra.mxu0 0.0
    %1013 = vmatprep.subr.mxu0 0.0
    %1014 = vmatpush1.msra.mxu0 0.0
    %1015 = vmatprep.subr.mxu0 0.0
    %1016 = vmatpush1.msra.mxu0 0.0
    %1017 = vmatprep.subr.mxu0 0.0
    %1018 = vmatpush1.msra.mxu0 0.0
    %1019 = vmatprep.subr.mxu0 0.0
    %1020 = vmatpush1.msra.mxu0 0.0
    %1021 = vmatprep.subr.mxu0 0.0
    %1022 = vmatpush1.msra.mxu0 0.0
    %1023 = vmatprep.subr.mxu0 0.0
    %1024 = vmatpush1.msra.mxu0 0.0
    %1025 = vmatprep.subr.mxu0 0.0
    %1026 = vmatpush1.msra.mxu0 0.0
    %1027 = vmatprep.subr.mxu0 0.0
    %1028 = vmatpush1.msra.mxu0 0.0
    %1029 = vmatprep.subr.mxu0 0.0
    %1030 = vmatpush1.msra.mxu0 0.0
    %1031 = vmatprep.subr.mxu0 0.0
    %1032 = vmatpush1.msra.mxu0 0.0
    %1033 = vmatprep.subr.mxu0 0.0
    %1034 = vmatpush1.msra.mxu0 0.0
    %1035 = vmatprep.subr.mxu0 0.0
    %1036 = vmatpush1.msra.mxu0 0.0
    %1037 = vmatprep.subr.mxu0 0.0
    %1038 = vmatpush1.msra.mxu0 0.0
    %1039 = vmatprep.subr.mxu0 0.0
    %1040 = vmatpush1.msra.mxu0 0.0
    %1041 = vmatprep.subr.mxu0 0.0
    %1042 = vmatpush1.msra.mxu0 0.0
    %1043 = vmatprep.subr.mxu0 0.0
    %1044 = vmatpush1.msra.mxu0 0.0
    %1045 = vmatprep.subr.mxu0 0.0
    %1046 = vmatpush1.msra.mxu0 0.0
    %1047 = vmatprep.subr.mxu0 0.0
    %1048 = vmatpush1.msra.mxu0 0.0
    %1049 = vmatprep.subr.mxu0 0.0
    %1050 = vmatpush1.msra.mxu0 0.0
    %1051 = vmatprep.subr.mxu0 0.0
    %1052 = vmatpush1.msra.mxu0 0.0
    %1053 = vmatprep.subr.mxu0 0.0
    %1054 = vmatpush1.msra.mxu0 0.0
    %1055 = vmatprep.subr.mxu0 0.0
    %1056 = vmatpush1.msra.mxu0 0.0
    %1057 = vmatprep.mubr.f32.mxu0 0.0
    %1058 = vmatmul.mubr.f32.gmra.mrb[0].mxu0 %v991
    %v1059 = vpop.f32.mrb[0].mxu0
    %v1060 = vadd.f32 0.0, %v1059
    %v1061 = vpop.f32.mrb[0].mxu0
    %1062 = vdwg.mxu0
    %v1065 = vunpack.c.l.s4 1966171168
    %v1066 = vunpack.c.0.s8 %v1065
    %v1067 = vlaneseq
    %v1068 = vshrl.u32 %v1067, 7
    %v1069 = vsub.s32 %v1066, %v1068
    %v1070 = vrot.slane %v1060, %v1069
    %v1071 = vcombine.high %v1070, %v1070
    %v1073 = vunpack.c.l.s4 1966171168
    %v1074 = vunpack.c.0.s8 %v1073
    %v1075 = vlaneseq
    %v1076 = vshrl.u32 %v1075, 7
    %v1077 = vsub.s32 %v1074, %v1076
    %v1078 = vrot.slane %v1070, %v1077
    %v1080 = vunpack.c.l.s4 1966171168
    %v1081 = vunpack.c.0.s8 %v1080
    %v1082 = vlaneseq
    %v1083 = vshrl.u32 %v1082, 7
    %v1084 = vsub.s32 %v1081, %v1083
    %v1085 = vrot.slane %v1071, %v1084
    %v1086 = vlaneseq
    %v1087 = vshrl.u32 %v1086, 7
    %v1088 = vsub.s32 0, %v1087
    %v1089 = vrot.slane %v1078, %v1088
    %v1090 = vlaneseq
    %v1091 = vshrl.u32 %v1090, 7
    %v1092 = vsub.s32 0, %v1091
    %v1093 = vrot.slane %v1085, %v1092
    %v1096 = vadd.f32 %v602, %v1089
    %v1097 = vadd.f32 %v607, %v1093
    %v1098 = vtanh.pop %v1096
    %v1099 = vtanh.pop %v1097
    %v1100 = vmul.f32 %v1098, %v760
    %v1101 = vmul.f32 %v1099, %v760
    %v1102 = vsel %vm182, %v1100, 0.0
    %1103 = vadd.xlane.f32.xlu0 %v1102
    %v1104 = vpop.xlane.xlu0 %1103
    %v1105 = vsel %vm182, %v1101, 0.0
    %1106 = vadd.xlane.f32.xlu0 %v1105
    %v1107 = vpop.xlane.xlu0 %1106
    %v1108 = vadd.f32 %v1104, 1e-07
    %v1109 = vadd.f32 %v1107, 1e-07
    %v1112 = vlaneseq
    %v1113 = vshrl.u32 %v1112, 7
    %v1114 = vsub.s32 %v611, %v1113
    %v1115 = vrot.slane %v1108, %v1114
    %v1116 = vlaneseq
    %v1117 = vshrl.u32 %v1116, 7
    %v1118 = vsub.s32 %v611, %v1117
    %v1119 = vrot.slane %v1109, %v1118
    %v1120 = vsel %vm299, %v1119, %v1115
    %v1122 = vsel %vm783, %v1120, -inf
    %1123 = vmax.xlane.f32.xlu0 %v1122
    %v1124 = vpop.xlane.xlu0 %1123
    %v1126 = vlaneseq
    %v1127 = vshrl.u32 %v1126, 7
    %v1128 = vsub.s32 0, %v1127
    %v1129 = vrot.slane %v1124, %v1128
    %v1130 = vlaneseq
    %v1131 = vshrl.u32 %v1130, 7
    %v1132 = vsub.s32 1, %v1131
    %v1133 = vrot.slane %v1124, %v1132
    %v1136 = vsub.f32 %v1108, %v1129
    %v1137 = vsub.f32 %v1109, %v1133
    %v1138 = vmul.f32 %v1136, 1.442695
    %v1139 = vpow.pop %v1138
    %v1140 = vmul.f32 %v1137, 1.442695
    %v1141 = vpow.pop %v1140
    %1144 = vset.pattern.permute.xlu0 0
    %1145 = vperm.xlu0 %1144, %v1139
    %v1146 = vpop.permute.xlu0 %1145
    %1147 = vset.pattern.permute.xlu0 0
    %1148 = vperm.xlu0 %1147, %v1141
    %v1149 = vpop.permute.xlu0 %1148
    %v1150 = vlaneseq
    %v1151 = vshrl.u32 %v1150, 7
    %v1152 = vsub.s32 %v611, %v1151
    %v1153 = vrot.slane %v1146, %v1152
    %v1154 = vlaneseq
    %v1155 = vshrl.u32 %v1154, 7
    %v1156 = vsub.s32 %v611, %v1155
    %v1157 = vrot.slane %v1149, %v1156
    %v1158 = vsel %vm299, %v1157, %v1153
    %v1160 = vsel %vm783, %v1158, 0.0
    %1161 = vadd.xlane.f32.xlu0 %v1160
    %v1162 = vpop.xlane.xlu0 %1161
    %v1163 = vlog2.pop %v1162
    %v1164 = vmul.f32 %v1163, 0.6931472
    %v1165 = vadd.f32 %v1124, %v1164
    %v1166 = vsub.f32 %v1165, %v1120
    %vm1167 = vcmp.gt.f32.partialorder %v930, 0.5
    %v1168 = vsel %vm1167, 7.0, %v1166
    %v1169 = vstv %s928
    %vm1170 = vcmp.ge.s32.totalorder %v611, %v1169
    %v1171 = vsel %vm1170, %v1168, 3e+38
    %v1172 = vsel %vm833, %v1171, inf
    %1173 = vmin.xlane.f32.xlu0 %v1172
    %v1174 = vpop.xlane.xlu0 %1173
    %v1175 = vrot.slane %v1174, 4
    %v1176 = vmin.f32 %v1174, %v1175
    %v1177 = vrot.slane %v1176, 2
    %v1178 = vmin.f32 %v1176, %v1177
    %v1179 = vrot.slane %v1178, 1
    %v1180 = vmin.f32 %v1178, %v1179
    %s1181 = vtos %v1180
    %v1182 = vstv %s1181
    %vm1183 = vcmp.eq.f32.partialorder %v1171, %v1182
    %vm1184 = vmand %vm1170, %vm1183
    %v1185 = vsel %vm1184, %v611, 8
    %v1186 = vsel %vm833, %v1185, 2147483647
    %v1187 = vand.u32 %v1186, 65535
    %v1188 = vshra.s32 %v1186, 16
    %v1189 = vcvt.s32.f32 %v1187
    %v1190 = vcvt.s32.f32 %v1188
    %1191 = vmin.xlane.f32.xlu0 %v1190
    %v1192 = vpop.xlane.xlu0 %1191
    %vm1193 = vcmp.eq.f32.partialorder %v1190, %v1192
    %v1194 = vsel %vm1193, %v1189, inf
    %1195 = vmin.xlane.f32.xlu0 %v1194
    %v1196 = vpop.xlane.xlu0 %1195
    %v1197 = vcvt.f32.s32 %v1196
    %v1198 = vcvt.f32.s32 %v1192
    %v1199 = vshll.u32 %v1198, 16
    %v1200 = vadd.s32 %v1199, %v1197
    %v1201 = vrot.slane %v1200, 4
    %vm1202 = vcmp.lt.s32.totalorder %v1200, %v1201
    %v1203 = vsel %vm1202, %v1200, %v1201
    %v1204 = vrot.slane %v1203, 2
    %vm1205 = vcmp.lt.s32.totalorder %v1203, %v1204
    %v1206 = vsel %vm1205, %v1203, %v1204
    %v1207 = vrot.slane %v1206, 1
    %vm1208 = vcmp.lt.s32.totalorder %v1206, %v1207
    %v1209 = vsel %vm1208, %v1206, %v1207
    %s1210 = vtos %v1209
    %v1211 = vstv %s1210
    %vm1212 = vcmp.lt.s32.totalorder %v611, %v1211
    %v1213 = vsel %vm1212, 1, 0
    %v1214 = vcvt.s32.f32 %v1213
    %p1215 = scmp.lt.s32.totalorder %s928, 8
    %s1216 = ssub.s32 %s1210, %s928
    %s1217 = sadd.s32 %s1216, 1
    %s1218 = scalar_select %p1215, %s1217, %s928
    %v1219 = vstv %s1218
    %vm1220 = vcmp.ge.s32.totalorder %v611, %v1219
    %v1221 = vsel %vm1220, %v1168, 3e+38
    %v1222 = vsel %vm881, %v1221, inf
    %1223 = vmin.xlane.f32.xlu0 %v1222
    %v1224 = vpop.xlane.xlu0 %1223
    %v1225 = vrot.slane %v1224, 4
    %v1226 = vmin.f32 %v1224, %v1225
    %v1227 = vrot.slane %v1226, 2
    %v1228 = vmin.f32 %v1226, %v1227
    %v1229 = vrot.slane %v1228, 1
    %v1230 = vmin.f32 %v1228, %v1229
    %s1231 = vtos %v1230
    %v1232 = vstv %s1231
    %vm1233 = vcmp.eq.f32.partialorder %v1221, %v1232
    %vm1234 = vmand %vm1220, %vm1233
    %v1235 = vsel %vm1234, %v611, 8
    %v1236 = vsel %vm881, %v1235, 2147483647
    %v1237 = vand.u32 %v1236, 65535
    %v1238 = vshra.s32 %v1236, 16
    %v1239 = vcvt.s32.f32 %v1237
    %v1240 = vcvt.s32.f32 %v1238
    %1241 = vmin.xlane.f32.xlu0 %v1240
    %v1242 = vpop.xlane.xlu0 %1241
    %vm1243 = vcmp.eq.f32.partialorder %v1240, %v1242
    %v1244 = vsel %vm1243, %v1239, inf
    %1245 = vmin.xlane.f32.xlu0 %v1244
    %v1246 = vpop.xlane.xlu0 %1245
    %v1247 = vcvt.f32.s32 %v1246
    %v1248 = vcvt.f32.s32 %v1242
    %v1249 = vshll.u32 %v1248, 16
    %v1250 = vadd.s32 %v1249, %v1247
    %v1251 = vrot.slane %v1250, 4
    %vm1252 = vcmp.lt.s32.totalorder %v1250, %v1251
    %v1253 = vsel %vm1252, %v1250, %v1251
    %v1254 = vrot.slane %v1253, 2
    %vm1255 = vcmp.lt.s32.totalorder %v1253, %v1254
    %v1256 = vsel %vm1255, %v1253, %v1254
    %v1257 = vrot.slane %v1256, 1
    %vm1258 = vcmp.lt.s32.totalorder %v1256, %v1257
    %v1259 = vsel %vm1258, %v1256, %v1257
    %s1260 = vtos %v1259
    %v1261 = vstv %s1260
    %vm1262 = vcmp.lt.s32.totalorder %v611, %v1261
    %v1263 = vsel %vm1262, 1, 0
    %v1264 = vcvt.s32.f32 %v1263
    %p1265 = scmp.lt.s32.totalorder %s1218, 8
    %s1266 = ssub.s32 %s1260, %s1218
    %s1267 = sadd.s32 %s1266, 1
    %s1268 = scalar_select %p1265, %s1267, %s1218
    %v1269 = vsel %vm929, %v1214, %v1264
    %v1270 = vsub.f32 1.0, %v1269
    %v1271 = vlaneseq
    %v1272 = vshrl.u32 %v1271, 7
    %v1273 = vsub.s32 0, %v1272
    %v1274 = vrot.slane %v1270, %v1273
    %1276 = vbcast.lane.b32.xlu0 %v1274, 256
    %v1277 = vpop.permute.xlu0 %1276
    %v1278 = vlaneseq
    %v1279 = vshrl.u32 %v1278, 7
    %v1280 = vsub.s32 1, %v1279
    %v1281 = vrot.slane %v1270, %v1280
    %1283 = vbcast.lane.b32.xlu0 %v1281, 256
    %v1284 = vpop.permute.xlu0 %1283
    %v1285 = vmul.f32 %v527, %v1277
    %v1286 = vmul.f32 %v532, %v1284
    %v1287 = vrot.slane %v1285, 4
    %v1288 = vadd.f32 %v1285, %v1287
    %v1289 = vrot.slane %v1288, 2
    %v1290 = vadd.f32 %v1288, %v1289
    %v1291 = vrot.slane %v1290, 1
    %v1292 = vadd.f32 %v1290, %v1291
    %v1293 = vrot.slane %v1286, 4
    %v1294 = vadd.f32 %v1286, %v1293
    %v1295 = vrot.slane %v1294, 2
    %v1296 = vadd.f32 %v1294, %v1295
    %v1297 = vrot.slane %v1296, 1
    %v1298 = vadd.f32 %v1296, %v1297
    %v1299 = vmul.f32 %v1292, 0.125
    %v1300 = vmul.f32 %v1298, 0.125
    %v1303 = vsel %vm299, %v1300, %v1299
    %v1305 = vadd.f32 %v377, %v1303
    %v1306 = vmul.f32 %v1305, %v615
    %v1307 = vtanh.pop %v1306
    %v1308 = vmul.f32 %v615, %v1307
    %v1309 = vadd.f32 %v1308, %v616
    %v1310 = vmul.f32 %v1309, %v981
    %1312 = vrot.lane.b32.xlu0 %v1309, 64
    %v1313 = vpop.permute.xlu0 %1312
    %v1315 = vmul.f32 %v1309, %v1313
    %1317 = vrot.lane.b32.xlu0 %v1315, 32
    %v1318 = vpop.permute.xlu0 %1317
    %v1320 = vadd.f32 %v1310, %v1318
    %v1321 = vtanh.pop %v1320
    %1323 = vrot.lane.b32.xlu0 %v1321, 64
    %v1324 = vpop.permute.xlu0 %1323
    %v1326 = vmul.f32 %v1309, %v1324
    %1328 = vrot.lane.b32.xlu0 %v1326, 32
    %v1329 = vpop.permute.xlu0 %1328
    %v1330 = vsel %vm182, %v1329, 0
    %1332 = vmatprep.subr.mxu0 0.0
    %1333 = vmatpush1.msra.mxu0 %v77
    %1334 = vmatprep.subr.mxu0 0.0
    %1335 = vmatpush1.msra.mxu0 %v78
    %1336 = vmatprep.subr.mxu0 0.0
    %1337 = vmatpush1.msra.mxu0 %v79
    %1338 = vmatprep.subr.mxu0 0.0
    %1339 = vmatpush1.msra.mxu0 %v80
    %1340 = vmatprep.subr.mxu0 0.0
    %1341 = vmatpush1.msra.mxu0 0.0
    %1342 = vmatprep.subr.mxu0 0.0
    %1343 = vmatpush1.msra.mxu0 0.0
    %1344 = vmatprep.subr.mxu0 0.0
    %1345 = vmatpush1.msra.mxu0 0.0
    %1346 = vmatprep.subr.mxu0 0.0
    %1347 = vmatpush1.msra.mxu0 0.0
    %1348 = vmatprep.subr.mxu0 0.0
    %1349 = vmatpush1.msra.mxu0 0.0
    %1350 = vmatprep.subr.mxu0 0.0
    %1351 = vmatpush1.msra.mxu0 0.0
    %1352 = vmatprep.subr.mxu0 0.0
    %1353 = vmatpush1.msra.mxu0 0.0
    %1354 = vmatprep.subr.mxu0 0.0
    %1355 = vmatpush1.msra.mxu0 0.0
    %1356 = vmatprep.subr.mxu0 0.0
    %1357 = vmatpush1.msra.mxu0 0.0
    %1358 = vmatprep.subr.mxu0 0.0
    %1359 = vmatpush1.msra.mxu0 0.0
    %1360 = vmatprep.subr.mxu0 0.0
    %1361 = vmatpush1.msra.mxu0 0.0
    %1362 = vmatprep.subr.mxu0 0.0
    %1363 = vmatpush1.msra.mxu0 0.0
    %1364 = vmatprep.subr.mxu0 0.0
    %1365 = vmatpush1.msra.mxu0 0.0
    %1366 = vmatprep.subr.mxu0 0.0
    %1367 = vmatpush1.msra.mxu0 0.0
    %1368 = vmatprep.subr.mxu0 0.0
    %1369 = vmatpush1.msra.mxu0 0.0
    %1370 = vmatprep.subr.mxu0 0.0
    %1371 = vmatpush1.msra.mxu0 0.0
    %1372 = vmatprep.subr.mxu0 0.0
    %1373 = vmatpush1.msra.mxu0 0.0
    %1374 = vmatprep.subr.mxu0 0.0
    %1375 = vmatpush1.msra.mxu0 0.0
    %1376 = vmatprep.subr.mxu0 0.0
    %1377 = vmatpush1.msra.mxu0 0.0
    %1378 = vmatprep.subr.mxu0 0.0
    %1379 = vmatpush1.msra.mxu0 0.0
    %1380 = vmatprep.subr.mxu0 0.0
    %1381 = vmatpush1.msra.mxu0 0.0
    %1382 = vmatprep.subr.mxu0 0.0
    %1383 = vmatpush1.msra.mxu0 0.0
    %1384 = vmatprep.subr.mxu0 0.0
    %1385 = vmatpush1.msra.mxu0 0.0
    %1386 = vmatprep.subr.mxu0 0.0
    %1387 = vmatpush1.msra.mxu0 0.0
    %1388 = vmatprep.subr.mxu0 0.0
    %1389 = vmatpush1.msra.mxu0 0.0
    %1390 = vmatprep.subr.mxu0 0.0
    %1391 = vmatpush1.msra.mxu0 0.0
    %1392 = vmatprep.subr.mxu0 0.0
    %1393 = vmatpush1.msra.mxu0 0.0
    %1394 = vmatprep.subr.mxu0 0.0
    %1395 = vmatpush1.msra.mxu0 0.0
    %1396 = vmatprep.mubr.f32.mxu0 0.0
    %1397 = vmatmul.mubr.f32.gmra.mrb[0].mxu0 %v1330
    %v1398 = vpop.f32.mrb[0].mxu0
    %v1399 = vadd.f32 0.0, %v1398
    %v1400 = vpop.f32.mrb[0].mxu0
    %1401 = vdwg.mxu0
    %v1404 = vunpack.c.l.s4 1966171168
    %v1405 = vunpack.c.0.s8 %v1404
    %v1406 = vlaneseq
    %v1407 = vshrl.u32 %v1406, 7
    %v1408 = vsub.s32 %v1405, %v1407
    %v1409 = vrot.slane %v1399, %v1408
    %v1410 = vcombine.high %v1409, %v1409
    %v1412 = vunpack.c.l.s4 1966171168
    %v1413 = vunpack.c.0.s8 %v1412
    %v1414 = vlaneseq
    %v1415 = vshrl.u32 %v1414, 7
    %v1416 = vsub.s32 %v1413, %v1415
    %v1417 = vrot.slane %v1409, %v1416
    %v1419 = vunpack.c.l.s4 1966171168
    %v1420 = vunpack.c.0.s8 %v1419
    %v1421 = vlaneseq
    %v1422 = vshrl.u32 %v1421, 7
    %v1423 = vsub.s32 %v1420, %v1422
    %v1424 = vrot.slane %v1410, %v1423
    %v1425 = vlaneseq
    %v1426 = vshrl.u32 %v1425, 7
    %v1427 = vsub.s32 0, %v1426
    %v1428 = vrot.slane %v1417, %v1427
    %v1429 = vlaneseq
    %v1430 = vshrl.u32 %v1429, 7
    %v1431 = vsub.s32 0, %v1430
    %v1432 = vrot.slane %v1424, %v1431
    %v1435 = vadd.f32 %v602, %v1428
    %v1436 = vadd.f32 %v607, %v1432
    %v1437 = vtanh.pop %v1435
    %v1438 = vtanh.pop %v1436
    %v1439 = vmul.f32 %v1437, %v760
    %v1440 = vmul.f32 %v1438, %v760
    %v1441 = vsel %vm182, %v1439, 0.0
    %1442 = vadd.xlane.f32.xlu0 %v1441
    %v1443 = vpop.xlane.xlu0 %1442
    %v1444 = vsel %vm182, %v1440, 0.0
    %1445 = vadd.xlane.f32.xlu0 %v1444
    %v1446 = vpop.xlane.xlu0 %1445
    %v1447 = vadd.f32 %v1443, 1e-07
    %v1448 = vadd.f32 %v1446, 1e-07
    %v1451 = vlaneseq
    %v1452 = vshrl.u32 %v1451, 7
    %v1453 = vsub.s32 %v611, %v1452
    %v1454 = vrot.slane %v1447, %v1453
    %v1455 = vlaneseq
    %v1456 = vshrl.u32 %v1455, 7
    %v1457 = vsub.s32 %v611, %v1456
    %v1458 = vrot.slane %v1448, %v1457
    %v1459 = vsel %vm299, %v1458, %v1454
    %v1461 = vsel %vm783, %v1459, -inf
    %1462 = vmax.xlane.f32.xlu0 %v1461
    %v1463 = vpop.xlane.xlu0 %1462
    %v1465 = vlaneseq
    %v1466 = vshrl.u32 %v1465, 7
    %v1467 = vsub.s32 0, %v1466
    %v1468 = vrot.slane %v1463, %v1467
    %v1469 = vlaneseq
    %v1470 = vshrl.u32 %v1469, 7
    %v1471 = vsub.s32 1, %v1470
    %v1472 = vrot.slane %v1463, %v1471
    %v1475 = vsub.f32 %v1447, %v1468
    %v1476 = vsub.f32 %v1448, %v1472
    %v1477 = vmul.f32 %v1475, 1.442695
    %v1478 = vpow.pop %v1477
    %v1479 = vmul.f32 %v1476, 1.442695
    %v1480 = vpow.pop %v1479
    %1483 = vset.pattern.permute.xlu0 0
    %1484 = vperm.xlu0 %1483, %v1478
    %v1485 = vpop.permute.xlu0 %1484
    %1486 = vset.pattern.permute.xlu0 0
    %1487 = vperm.xlu0 %1486, %v1480
    %v1488 = vpop.permute.xlu0 %1487
    %v1489 = vlaneseq
    %v1490 = vshrl.u32 %v1489, 7
    %v1491 = vsub.s32 %v611, %v1490
    %v1492 = vrot.slane %v1485, %v1491
    %v1493 = vlaneseq
    %v1494 = vshrl.u32 %v1493, 7
    %v1495 = vsub.s32 %v611, %v1494
    %v1496 = vrot.slane %v1488, %v1495
    %v1497 = vsel %vm299, %v1496, %v1492
    %v1499 = vsel %vm783, %v1497, 0.0
    %1500 = vadd.xlane.f32.xlu0 %v1499
    %v1501 = vpop.xlane.xlu0 %1500
    %v1502 = vlog2.pop %v1501
    %v1503 = vmul.f32 %v1502, 0.6931472
    %v1504 = vadd.f32 %v1463, %v1503
    %v1505 = vsub.f32 %v1504, %v1459
    %vm1506 = vcmp.gt.f32.partialorder %v1269, 0.5
    %v1507 = vsel %vm1506, 7.0, %v1505
    %v1508 = vstv %s1268
    %vm1509 = vcmp.ge.s32.totalorder %v611, %v1508
    %v1510 = vsel %vm1509, %v1507, 3e+38
    %v1511 = vsel %vm833, %v1510, inf
    %1512 = vmin.xlane.f32.xlu0 %v1511
    %v1513 = vpop.xlane.xlu0 %1512
    %v1514 = vrot.slane %v1513, 4
    %v1515 = vmin.f32 %v1513, %v1514
    %v1516 = vrot.slane %v1515, 2
    %v1517 = vmin.f32 %v1515, %v1516
    %v1518 = vrot.slane %v1517, 1
    %v1519 = vmin.f32 %v1517, %v1518
    %s1520 = vtos %v1519
    %v1521 = vstv %s1520
    %vm1522 = vcmp.eq.f32.partialorder %v1510, %v1521
    %vm1523 = vmand %vm1509, %vm1522
    %v1524 = vsel %vm1523, %v611, 8
    %v1525 = vsel %vm833, %v1524, 2147483647
    %v1526 = vand.u32 %v1525, 65535
    %v1527 = vshra.s32 %v1525, 16
    %v1528 = vcvt.s32.f32 %v1526
    %v1529 = vcvt.s32.f32 %v1527
    %1530 = vmin.xlane.f32.xlu0 %v1529
    %v1531 = vpop.xlane.xlu0 %1530
    %vm1532 = vcmp.eq.f32.partialorder %v1529, %v1531
    %v1533 = vsel %vm1532, %v1528, inf
    %1534 = vmin.xlane.f32.xlu0 %v1533
    %v1535 = vpop.xlane.xlu0 %1534
    %v1536 = vcvt.f32.s32 %v1535
    %v1537 = vcvt.f32.s32 %v1531
    %v1538 = vshll.u32 %v1537, 16
    %v1539 = vadd.s32 %v1538, %v1536
    %v1540 = vrot.slane %v1539, 4
    %vm1541 = vcmp.lt.s32.totalorder %v1539, %v1540
    %v1542 = vsel %vm1541, %v1539, %v1540
    %v1543 = vrot.slane %v1542, 2
    %vm1544 = vcmp.lt.s32.totalorder %v1542, %v1543
    %v1545 = vsel %vm1544, %v1542, %v1543
    %v1546 = vrot.slane %v1545, 1
    %vm1547 = vcmp.lt.s32.totalorder %v1545, %v1546
    %v1548 = vsel %vm1547, %v1545, %v1546
    %s1549 = vtos %v1548
    %v1550 = vstv %s1549
    %vm1551 = vcmp.lt.s32.totalorder %v611, %v1550
    %v1552 = vsel %vm1551, 1, 0
    %v1553 = vcvt.s32.f32 %v1552
    %p1554 = scmp.lt.s32.totalorder %s1268, 8
    %s1555 = ssub.s32 %s1549, %s1268
    %s1556 = sadd.s32 %s1555, 1
    %s1557 = scalar_select %p1554, %s1556, %s1268
    %v1558 = vstv %s1557
    %vm1559 = vcmp.ge.s32.totalorder %v611, %v1558
    %v1560 = vsel %vm1559, %v1507, 3e+38
    %v1561 = vsel %vm881, %v1560, inf
    %1562 = vmin.xlane.f32.xlu0 %v1561
    %v1563 = vpop.xlane.xlu0 %1562
    %v1564 = vrot.slane %v1563, 4
    %v1565 = vmin.f32 %v1563, %v1564
    %v1566 = vrot.slane %v1565, 2
    %v1567 = vmin.f32 %v1565, %v1566
    %v1568 = vrot.slane %v1567, 1
    %v1569 = vmin.f32 %v1567, %v1568
    %s1570 = vtos %v1569
    %v1571 = vstv %s1570
    %vm1572 = vcmp.eq.f32.partialorder %v1560, %v1571
    %vm1573 = vmand %vm1559, %vm1572
    %v1574 = vsel %vm1573, %v611, 8
    %v1575 = vsel %vm881, %v1574, 2147483647
    %v1576 = vand.u32 %v1575, 65535
    %v1577 = vshra.s32 %v1575, 16
    %v1578 = vcvt.s32.f32 %v1576
    %v1579 = vcvt.s32.f32 %v1577
    %1580 = vmin.xlane.f32.xlu0 %v1579
    %v1581 = vpop.xlane.xlu0 %1580
    %vm1582 = vcmp.eq.f32.partialorder %v1579, %v1581
    %v1583 = vsel %vm1582, %v1578, inf
    %1584 = vmin.xlane.f32.xlu0 %v1583
    %v1585 = vpop.xlane.xlu0 %1584
    %v1586 = vcvt.f32.s32 %v1585
    %v1587 = vcvt.f32.s32 %v1581
    %v1588 = vshll.u32 %v1587, 16
    %v1589 = vadd.s32 %v1588, %v1586
    %v1590 = vrot.slane %v1589, 4
    %vm1591 = vcmp.lt.s32.totalorder %v1589, %v1590
    %v1592 = vsel %vm1591, %v1589, %v1590
    %v1593 = vrot.slane %v1592, 2
    %vm1594 = vcmp.lt.s32.totalorder %v1592, %v1593
    %v1595 = vsel %vm1594, %v1592, %v1593
    %v1596 = vrot.slane %v1595, 1
    %vm1597 = vcmp.lt.s32.totalorder %v1595, %v1596
    %v1598 = vsel %vm1597, %v1595, %v1596
    %s1599 = vtos %v1598
    %v1600 = vstv %s1599
    %vm1601 = vcmp.lt.s32.totalorder %v611, %v1600
    %v1602 = vsel %vm1601, 1, 0
    %v1603 = vcvt.s32.f32 %v1602
    %v1604 = vsel %vm929, %v1553, %v1603
    %v1605 = vsub.f32 1.0, %v1604
    %v1606 = vlaneseq
    %v1607 = vshrl.u32 %v1606, 7
    %v1608 = vsub.s32 0, %v1607
    %v1609 = vrot.slane %v1605, %v1608
    %1611 = vbcast.lane.b32.xlu0 %v1609, 256
    %v1612 = vpop.permute.xlu0 %1611
    %v1613 = vlaneseq
    %v1614 = vshrl.u32 %v1613, 7
    %v1615 = vsub.s32 1, %v1614
    %v1616 = vrot.slane %v1605, %v1615
    %1618 = vbcast.lane.b32.xlu0 %v1616, 256
    %v1619 = vpop.permute.xlu0 %1618
    %v1620 = vmul.f32 %v527, %v1612
    %v1621 = vmul.f32 %v532, %v1619
    %v1622 = vrot.slane %v1620, 4
    %v1623 = vadd.f32 %v1620, %v1622
    %v1624 = vrot.slane %v1623, 2
    %v1625 = vadd.f32 %v1623, %v1624
    %v1626 = vrot.slane %v1625, 1
    %v1627 = vadd.f32 %v1625, %v1626
    %v1628 = vrot.slane %v1621, 4
    %v1629 = vadd.f32 %v1621, %v1628
    %v1630 = vrot.slane %v1629, 2
    %v1631 = vadd.f32 %v1629, %v1630
    %v1632 = vrot.slane %v1631, 1
    %v1633 = vadd.f32 %v1631, %v1632
    %v1634 = vmul.f32 %v1627, 0.125
    %v1635 = vmul.f32 %v1633, 0.125
    %v1638 = vsel %vm299, %v1635, %v1634
    %v1640 = vadd.f32 %v377, %v1638
    %v1641 = vmul.f32 %v1640, %v615
    %v1642 = vtanh.pop %v1641
    %v1643 = vmul.f32 %v615, %v1642
    %v1644 = vadd.f32 %v1643, %v616
    %v1645 = vmul.f32 %v1644, %v1320
    %1647 = vrot.lane.b32.xlu0 %v1644, 64
    %v1648 = vpop.permute.xlu0 %1647
    %v1650 = vmul.f32 %v1644, %v1648
    %1652 = vrot.lane.b32.xlu0 %v1650, 32
    %v1653 = vpop.permute.xlu0 %1652
    %v1655 = vadd.f32 %v1645, %v1653
    %v1656 = vtanh.pop %v1655
    %1658 = vrot.lane.b32.xlu0 %v1656, 64
    %v1659 = vpop.permute.xlu0 %1658
    %v1661 = vmul.f32 %v1644, %v1659
    %1663 = vrot.lane.b32.xlu0 %v1661, 32
    %v1664 = vpop.permute.xlu0 %1663
    %v1665 = vsel %vm182, %v1664, 0
    %1667 = vmatprep.subr.mxu0 0.0
    %1668 = vmatpush1.msra.mxu0 %v77
    %1669 = vmatprep.subr.mxu0 0.0
    %1670 = vmatpush1.msra.mxu0 %v78
    %1671 = vmatprep.subr.mxu0 0.0
    %1672 = vmatpush1.msra.mxu0 %v79
    %1673 = vmatprep.subr.mxu0 0.0
    %1674 = vmatpush1.msra.mxu0 %v80
    %1675 = vmatprep.subr.mxu0 0.0
    %1676 = vmatpush1.msra.mxu0 0.0
    %1677 = vmatprep.subr.mxu0 0.0
    %1678 = vmatpush1.msra.mxu0 0.0
    %1679 = vmatprep.subr.mxu0 0.0
    %1680 = vmatpush1.msra.mxu0 0.0
    %1681 = vmatprep.subr.mxu0 0.0
    %1682 = vmatpush1.msra.mxu0 0.0
    %1683 = vmatprep.subr.mxu0 0.0
    %1684 = vmatpush1.msra.mxu0 0.0
    %1685 = vmatprep.subr.mxu0 0.0
    %1686 = vmatpush1.msra.mxu0 0.0
    %1687 = vmatprep.subr.mxu0 0.0
    %1688 = vmatpush1.msra.mxu0 0.0
    %1689 = vmatprep.subr.mxu0 0.0
    %1690 = vmatpush1.msra.mxu0 0.0
    %1691 = vmatprep.subr.mxu0 0.0
    %1692 = vmatpush1.msra.mxu0 0.0
    %1693 = vmatprep.subr.mxu0 0.0
    %1694 = vmatpush1.msra.mxu0 0.0
    %1695 = vmatprep.subr.mxu0 0.0
    %1696 = vmatpush1.msra.mxu0 0.0
    %1697 = vmatprep.subr.mxu0 0.0
    %1698 = vmatpush1.msra.mxu0 0.0
    %1699 = vmatprep.subr.mxu0 0.0
    %1700 = vmatpush1.msra.mxu0 0.0
    %1701 = vmatprep.subr.mxu0 0.0
    %1702 = vmatpush1.msra.mxu0 0.0
    %1703 = vmatprep.subr.mxu0 0.0
    %1704 = vmatpush1.msra.mxu0 0.0
    %1705 = vmatprep.subr.mxu0 0.0
    %1706 = vmatpush1.msra.mxu0 0.0
    %1707 = vmatprep.subr.mxu0 0.0
    %1708 = vmatpush1.msra.mxu0 0.0
    %1709 = vmatprep.subr.mxu0 0.0
    %1710 = vmatpush1.msra.mxu0 0.0
    %1711 = vmatprep.subr.mxu0 0.0
    %1712 = vmatpush1.msra.mxu0 0.0
    %1713 = vmatprep.subr.mxu0 0.0
    %1714 = vmatpush1.msra.mxu0 0.0
    %1715 = vmatprep.subr.mxu0 0.0
    %1716 = vmatpush1.msra.mxu0 0.0
    %1717 = vmatprep.subr.mxu0 0.0
    %1718 = vmatpush1.msra.mxu0 0.0
    %1719 = vmatprep.subr.mxu0 0.0
    %1720 = vmatpush1.msra.mxu0 0.0
    %1721 = vmatprep.subr.mxu0 0.0
    %1722 = vmatpush1.msra.mxu0 0.0
    %1723 = vmatprep.subr.mxu0 0.0
    %1724 = vmatpush1.msra.mxu0 0.0
    %1725 = vmatprep.subr.mxu0 0.0
    %1726 = vmatpush1.msra.mxu0 0.0
    %1727 = vmatprep.subr.mxu0 0.0
    %1728 = vmatpush1.msra.mxu0 0.0
    %1729 = vmatprep.subr.mxu0 0.0
    %1730 = vmatpush1.msra.mxu0 0.0
    %1731 = vmatprep.mubr.f32.mxu0 0.0
    %1732 = vmatmul.mubr.f32.gmra.mrb[0].mxu0 %v1665
    %v1733 = vpop.f32.mrb[0].mxu0
    %v1734 = vadd.f32 0.0, %v1733
    %v1735 = vpop.f32.mrb[0].mxu0
    %1736 = vdwg.mxu0
    %v1739 = vunpack.c.l.s4 1966171168
    %v1740 = vunpack.c.0.s8 %v1739
    %v1741 = vlaneseq
    %v1742 = vshrl.u32 %v1741, 7
    %v1743 = vsub.s32 %v1740, %v1742
    %v1744 = vrot.slane %v1734, %v1743
    %v1745 = vcombine.high %v1744, %v1744
    %v1747 = vunpack.c.l.s4 1966171168
    %v1748 = vunpack.c.0.s8 %v1747
    %v1749 = vlaneseq
    %v1750 = vshrl.u32 %v1749, 7
    %v1751 = vsub.s32 %v1748, %v1750
    %v1752 = vrot.slane %v1744, %v1751
    %v1754 = vunpack.c.l.s4 1966171168
    %v1755 = vunpack.c.0.s8 %v1754
    %v1756 = vlaneseq
    %v1757 = vshrl.u32 %v1756, 7
    %v1758 = vsub.s32 %v1755, %v1757
    %v1759 = vrot.slane %v1745, %v1758
    %v1760 = vlaneseq
    %v1761 = vshrl.u32 %v1760, 7
    %v1762 = vsub.s32 0, %v1761
    %v1763 = vrot.slane %v1752, %v1762
    %v1764 = vlaneseq
    %v1765 = vshrl.u32 %v1764, 7
    %v1766 = vsub.s32 0, %v1765
    %v1767 = vrot.slane %v1759, %v1766
    %v1770 = vadd.f32 %v602, %v1763
    %v1771 = vadd.f32 %v607, %v1767
    %v1772 = vtanh.pop %v1770
    %v1773 = vtanh.pop %v1771
    %v1774 = vmul.f32 %v1772, %v760
    %v1775 = vmul.f32 %v1773, %v760
    %v1776 = vsel %vm182, %v1774, 0.0
    %1777 = vadd.xlane.f32.xlu0 %v1776
    %v1778 = vpop.xlane.xlu0 %1777
    %v1779 = vsel %vm182, %v1775, 0.0
    %1780 = vadd.xlane.f32.xlu0 %v1779
    %v1781 = vpop.xlane.xlu0 %1780
    %v1782 = vadd.f32 %v1778, 1e-07
    %v1783 = vadd.f32 %v1781, 1e-07
    %v1786 = vlaneseq
    %v1787 = vshrl.u32 %v1786, 7
    %v1788 = vsub.s32 %v611, %v1787
    %v1789 = vrot.slane %v1782, %v1788
    %v1790 = vlaneseq
    %v1791 = vshrl.u32 %v1790, 7
    %v1792 = vsub.s32 %v611, %v1791
    %v1793 = vrot.slane %v1783, %v1792
    %v1794 = vsel %vm299, %v1793, %v1789
    %v1796 = vsel %vm783, %v1794, -inf
    %1797 = vmax.xlane.f32.xlu0 %v1796
    %v1798 = vpop.xlane.xlu0 %1797
    %v1800 = vlaneseq
    %v1801 = vshrl.u32 %v1800, 7
    %v1802 = vsub.s32 0, %v1801
    %v1803 = vrot.slane %v1798, %v1802
    %v1804 = vlaneseq
    %v1805 = vshrl.u32 %v1804, 7
    %v1806 = vsub.s32 1, %v1805
    %v1807 = vrot.slane %v1798, %v1806
    %v1810 = vsub.f32 %v1782, %v1803
    %v1811 = vsub.f32 %v1783, %v1807
    %v1812 = vmul.f32 %v1810, 1.442695
    %v1813 = vpow.pop %v1812
    %v1814 = vmul.f32 %v1811, 1.442695
    %v1815 = vpow.pop %v1814
    %1818 = vset.pattern.permute.xlu0 0
    %1819 = vperm.xlu0 %1818, %v1813
    %v1820 = vpop.permute.xlu0 %1819
    %1821 = vset.pattern.permute.xlu0 0
    %1822 = vperm.xlu0 %1821, %v1815
    %v1823 = vpop.permute.xlu0 %1822
    %v1824 = vlaneseq
    %v1825 = vshrl.u32 %v1824, 7
    %v1826 = vsub.s32 %v611, %v1825
    %v1827 = vrot.slane %v1820, %v1826
    %v1828 = vlaneseq
    %v1829 = vshrl.u32 %v1828, 7
    %v1830 = vsub.s32 %v611, %v1829
    %v1831 = vrot.slane %v1823, %v1830
    %v1832 = vsel %vm299, %v1831, %v1827
    %v1834 = vsel %vm783, %v1832, 0.0
    %1835 = vadd.xlane.f32.xlu0 %v1834
    %v1836 = vpop.xlane.xlu0 %1835
    %v1837 = vlog2.pop %v1836
    %v1838 = vmul.f32 %v1837, 0.6931472
    %v1839 = vadd.f32 %v1798, %v1838
    %v1840 = vsub.f32 %v1839, %v1794
    %vm1841 = vcmp.gt.f32.partialorder %v1604, 0.5
    %v1842 = vsel %vm1841, 7.0, %v1840
    %v1845 = vunpack.c.l.s4 1966171168
    %v1846 = vunpack.c.0.s8 %v1845
    %v1847 = vlaneseq
    %v1848 = vshrl.u32 %v1847, 7
    %v1849 = vsub.s32 %v1846, %v1848
    %v1850 = vrot.slane %v830, %v1849
    %v1851 = vcombine.high %v1850, %v1850
    %v1853 = vunpack.c.l.s4 1966171168
    %v1854 = vunpack.c.0.s8 %v1853
    %v1855 = vlaneseq
    %v1856 = vshrl.u32 %v1855, 7
    %v1857 = vsub.s32 %v1854, %v1856
    %v1858 = vrot.slane %v1850, %v1857
    %v1860 = vunpack.c.l.s4 1966171168
    %v1861 = vunpack.c.0.s8 %v1860
    %v1862 = vlaneseq
    %v1863 = vshrl.u32 %v1862, 7
    %v1864 = vsub.s32 %v1861, %v1863
    %v1865 = vrot.slane %v1851, %v1864
    %v1870 = vunpack.c.l.s4 1966171168
    %v1871 = vunpack.c.0.s8 %v1870
    %v1872 = vlaneseq
    %v1873 = vshrl.u32 %v1872, 7
    %v1874 = vsub.s32 %v1871, %v1873
    %v1875 = vrot.slane %v1168, %v1874
    %v1876 = vcombine.high %v1875, %v1875
    %v1878 = vunpack.c.l.s4 1966171168
    %v1879 = vunpack.c.0.s8 %v1878
    %v1880 = vlaneseq
    %v1881 = vshrl.u32 %v1880, 7
    %v1882 = vsub.s32 %v1879, %v1881
    %v1883 = vrot.slane %v1875, %v1882
    %v1885 = vunpack.c.l.s4 1966171168
    %v1886 = vunpack.c.0.s8 %v1885
    %v1887 = vlaneseq
    %v1888 = vshrl.u32 %v1887, 7
    %v1889 = vsub.s32 %v1886, %v1888
    %v1890 = vrot.slane %v1876, %v1889
    %v1893 = vunpack.c.l.s4 1966171168
    %v1894 = vunpack.c.0.s8 %v1893
    %v1895 = vlaneseq
    %v1896 = vshrl.u32 %v1895, 7
    %v1897 = vsub.s32 %v1894, %v1896
    %v1898 = vrot.slane %v1507, %v1897
    %v1899 = vcombine.high %v1898, %v1898
    %v1901 = vunpack.c.l.s4 1966171168
    %v1902 = vunpack.c.0.s8 %v1901
    %v1903 = vlaneseq
    %v1904 = vshrl.u32 %v1903, 7
    %v1905 = vsub.s32 %v1902, %v1904
    %v1906 = vrot.slane %v1898, %v1905
    %v1908 = vunpack.c.l.s4 1966171168
    %v1909 = vunpack.c.0.s8 %v1908
    %v1910 = vlaneseq
    %v1911 = vshrl.u32 %v1910, 7
    %v1912 = vsub.s32 %v1909, %v1911
    %v1913 = vrot.slane %v1899, %v1912
    %v1916 = vunpack.c.l.s4 1966171168
    %v1917 = vunpack.c.0.s8 %v1916
    %v1918 = vlaneseq
    %v1919 = vshrl.u32 %v1918, 7
    %v1920 = vsub.s32 %v1917, %v1919
    %v1921 = vrot.slane %v1842, %v1920
    %v1922 = vcombine.high %v1921, %v1921
    %v1924 = vunpack.c.l.s4 1966171168
    %v1925 = vunpack.c.0.s8 %v1924
    %v1926 = vlaneseq
    %v1927 = vshrl.u32 %v1926, 7
    %v1928 = vsub.s32 %v1925, %v1927
    %v1929 = vrot.slane %v1921, %v1928
    %v1931 = vunpack.c.l.s4 1966171168
    %v1932 = vunpack.c.0.s8 %v1931
    %v1933 = vlaneseq
    %v1934 = vshrl.u32 %v1933, 7
    %v1935 = vsub.s32 %v1932, %v1934
    %v1936 = vrot.slane %v1922, %v1935
    %v1937 = vlaneseq
    %v1938 = vshrl.u32 %v1937, 7
    %v1939 = vsub.s32 0, %v1938
    %v1940 = vrot.slane %v1883, %v1939
    %v1941 = vlaneseq
    %v1942 = vshrl.u32 %v1941, 7
    %v1943 = vsub.s32 0, %v1942
    %v1944 = vrot.slane %v1890, %v1943
    %v1947 = vlaneseq
    %v1948 = vshrl.u32 %v1947, 7
    %v1949 = vsub.s32 0, %v1948
    %v1950 = vrot.slane %v1906, %v1949
    %v1951 = vlaneseq
    %v1952 = vshrl.u32 %v1951, 7
    %v1953 = vsub.s32 0, %v1952
    %v1954 = vrot.slane %v1913, %v1953
    %v1957 = vlaneseq
    %v1958 = vshrl.u32 %v1957, 7
    %v1959 = vsub.s32 0, %v1958
    %v1960 = vrot.slane %v1929, %v1959
    %v1961 = vlaneseq
    %v1962 = vshrl.u32 %v1961, 7
    %v1963 = vsub.s32 0, %v1962
    %v1964 = vrot.slane %v1936, %v1963
    %v1967 = vsel %vm929, %v1858, %v1940
    %v1968 = vsel %vm929, %v1865, %v1944
    %vm1969 = vcmask 1041408
    %v1970 = vsel %vm1969, %v1967, %v1950
    %v1971 = vsel %vm1969, %v1968, %v1954
    %vm1972 = vcmask 1042432
    %v1973 = vsel %vm1972, %v1970, %v1960
    %v1974 = vsel %vm1972, %v1971, %v1964
    %vm1975 = vcmask 60416
    %1976 = vst.msk [vmem:[#allocation8] sm:$0xf] %vm1975, %v1973
    %1977 = vst.msk [vmem:[#allocation8 + $0x4] sm:$0xf] %vm1975, %v1974
    // Predicated region
    $region26: #{sdtt_forward.1} parent=1 // pred_check
      _
    $region27: #{sdtt_forward.1} parent=1 // pred_check_branch
      %1979 = sbr.rel (0) target = $region29
    $region28: #{sdtt_forward.1} parent=1 // pred_region
      %s1981 = ssub.s32 128, 128
      %1982 = vsyncadd [#allocation4], %s1981
      %s1983 = sshll.u32 [#allocation8], 4
      %s1984 = int_to_ptr.vmem [resolvable:$true] %s1983
      %1989 = dma.vmem_to_hbm [thread:$0]  %s1984, 128, %s3, [#allocation4], 64, 64, 4
    $region29: #{sdtt_forward.1} parent=1 // pred_fallthru
      _
    // Predicated region
    $region30: #{sdtt_forward.1} parent=1 // pred_check
      _
    $region31: #{sdtt_forward.1} parent=1 // pred_check_branch
      %1991 = sbr.rel (0) target = $region33
    $region32: #{sdtt_forward.1} parent=1 // pred_region
      %1992 = dma.done [#allocation4], 128
    $region33: #{sdtt_forward.1} parent=1 // pred_fallthru
      _
    %1993 = vsyncpa [#allocation3], 1
    %1994 = vsyncpa [#allocation6], 1
    %1995 = vsyncpa [#allocation4], 1

</llo_original>
